<compile_context>
chip_gen: v7x
topology: tpu7x:2x2x1
jax: 0.10.0
libtpu: 0.0.40
codegen_flags: <defaults>
</compile_context>

<pallas_src>
import math

import jax
import jax.numpy as jnp
from jax.experimental import pallas as pl
from jax.experimental.pallas import tpu as pltpu


def _upsample_conv3x3_kernel(x_ref, w_ref, b_ref, o_ref):
    """Fused (2x nearest upsample + 3x3 'same' conv) for one (n, h-tile) block.

    x_ref : (1, H+2, W+2, Cin)    zero-padded ORIGINAL-resolution image (NHWC),
                                  resident in VMEM across the h-tile axis.
    w_ref : (2, 2, 4*Cin, Cout)   folded sub-pixel weights [py, px, (tx,ty,ci), co]
    b_ref : (1, 2*Cout)           bias duplicated for the two px phases (f32)
    o_ref : (1, th, 2, W, 2*Cout) phase view of output rows [2*i0, 2*(i0+th)).
    """
    th = o_ref.shape[1]
    W = o_ref.shape[3]
    i0 = pl.multiple_of(pl.program_id(1) * th, th)

    for py in range(2):                     # output-row phase (static unroll)
        # Fold the 2 vertical taps of this phase into the contraction axis.
        rows = jnp.concatenate(
            [x_ref[0, pl.ds(i0 + py, th), :, :],
             x_ref[0, pl.ds(i0 + py + 1, th), :, :]],
            axis=-1)                        # (th, W+2, 2*Cin)
        halves = []
        for px in range(2):                 # output-col phase
            # im2col of the 2 horizontal taps -> one big-K MXU matmul (K=4*Cin).
            patch = jnp.concatenate(
                [rows[:, px:px + W, :], rows[:, px + 1:px + 1 + W, :]],
                axis=-1)                    # (th, W, 4*Cin)
            halves.append(
                jnp.einsum("hwc,cf->hwf", patch, w_ref[py, px],
                           preferred_element_type=jnp.float32))
        # Concatenating the two px phases along the lane axis matches the
        # (..., W, 2*Cout) phase-view layout exactly -> clean contiguous store.
        out_row = jnp.concatenate(halves, axis=-1) + b_ref[...]  # (th, W, 2*Cout)
        o_ref[0, :, py, :, :] = out_row.astype(o_ref.dtype)


def _auto_tile_h(h, w, cout2, itemsize, budget_bytes=1 << 20):
    """Largest divisor of H whose output tile stays under ~1 MiB."""
    row_bytes = max(1, 2 * w * cout2 * itemsize)  # output bytes per original row
    cap = max(1, budget_bytes // row_bytes)
    best = 1
    for t in range(1, h + 1):
        if h % t == 0 and t <= cap:
            best = t
    return best


def upsample2x_conv3x3(x_pad_nhwc, w_folded, bias2, *, out_dtype, tile_h=None):
    """x_pad_nhwc: (N, H+2, W+2, Cin) zero-padded input (compute dtype).

    Returns the phase view (N, H, 2, W, 2*Cout); the caller reshapes it to
    (N, 2H, 2W, Cout) for free (contiguous row-major reshape).
    """
    n, hp2, wp2, cin = x_pad_nhwc.shape
    h, w = hp2 - 2, wp2 - 2
    cout2 = bias2.shape[-1]
    k4 = w_folded.shape[2]
    assert k4 == 4 * cin

    if tile_h is None:
        tile_h = _auto_tile_h(h, w, cout2, jnp.dtype(out_dtype).itemsize)
    tile_h = math.gcd(max(int(tile_h), 1), h)   # ensure it divides H
    grid = (n, h // tile_h)

    return pl.pallas_call(
        _upsample_conv3x3_kernel,
        out_shape=jax.ShapeDtypeStruct((n, h, 2, w, cout2), out_dtype),
        grid_spec=pltpu.PrefetchScalarGridSpec(
            num_scalar_prefetch=0,
            grid=grid,
            in_specs=[
                # Whole padded original-resolution image per batch element; the
                # block index is constant along the h axis, so it is DMA'd once
                # per n and stays resident in VMEM across the h tiles.
                pl.BlockSpec((1, hp2, wp2, cin), lambda nn, hh: (nn, 0, 0, 0)),
                pl.BlockSpec((2, 2, k4, cout2 // 2), lambda nn, hh: (0, 0, 0, 0)),
                pl.BlockSpec((1, cout2), lambda nn, hh: (0, 0)),
            ],
            out_specs=pl.BlockSpec((1, tile_h, 2, w, cout2),
                                   lambda nn, hh: (nn, hh, 0, 0, 0)),
        ),
        compiler_params=pltpu.CompilerParams(
            dimension_semantics=("parallel", "parallel"),
            vmem_limit_bytes=32 * 1024 * 1024),
    )(x_pad_nhwc, w_folded, bias2)


class UpsamplePallas:
    """Pallas mirror of the PyTorch Upsample module (dims=2 only)."""

    def __init__(self, channels, use_conv, dims=2, out_channels=None, key=None,
                 compute_dtype=jnp.float32, tile_h=None):
        assert dims == 2, "only dims=2 implemented"
        # TODO(synk): dims=1 and dims=3 variants of the module are not implemented.
        self.channels = channels
        self.out_channels = out_channels or channels
        self.use_conv = use_conv
        self.dims = dims
        self.compute_dtype = compute_dtype
        self.tile_h = tile_h
        if use_conv:
            key = key if key is not None else jax.random.PRNGKey(0)
            kw, kb = jax.random.split(key)
            fan_in = channels * 3 * 3
            bound = 1.0 / (fan_in ** 0.5)
            # PyTorch layout (Cout, Cin, 3, 3) -> HWIO (3, 3, Cin, Cout)
            w_pt = jax.random.uniform(
                kw, (self.out_channels, channels, 3, 3),
                minval=-bound, maxval=bound, dtype=jnp.float32)
            self.weight = jnp.transpose(w_pt, (2, 3, 1, 0))
            self.bias = jax.random.uniform(
                kb, (self.out_channels,), minval=-bound, maxval=bound,
                dtype=jnp.float32)

            # ---- fold the 3x3 kernel into the 4 sub-pixel phases ------------
            # Phase (py,px) of (3x3 conv o 2x-nearest-upsample) is a 2x2 conv
            # over the original image with
            #   Wp[py,px,ty,tx] = sum_{ky,kx} A[py,ty,ky] * A[px,tx,kx] * w[ky,kx]
            fold = jnp.asarray([[[1., 0., 0.], [0., 1., 1.]],
                                [[1., 1., 0.], [0., 0., 1.]]], jnp.float32)
            wp = jnp.einsum("pyk,qxl,klcf->pqyxcf", fold, fold, self.weight)
            # kernel contraction order is (tx, ty, ci)
            self._w_folded = jnp.transpose(wp, (0, 1, 3, 2, 4, 5)).reshape(
                2, 2, 4 * channels, self.out_channels).astype(compute_dtype)
            self._bias2 = jnp.concatenate([self.bias, self.bias]).reshape(
                1, 2 * self.out_channels).astype(jnp.float32)

    def __call__(self, x_nchw):
        assert x_nchw.shape[1] == self.channels
        if not self.use_conv:
            # Pure data movement — nothing to fuse/compute in a kernel.
            return jnp.repeat(jnp.repeat(x_nchw, 2, axis=2), 2, axis=3)

        n, c, h, w = x_nchw.shape
        # Single small glue pass over the ORIGINAL-resolution input
        # (layout change + 1px zero pad + dtype cast fuse in XLA).
        x_nhwc = jnp.transpose(x_nchw, (0, 2, 3, 1))
        x_pad = jnp.pad(x_nhwc, ((0, 0), (1, 1), (1, 1), (0, 0))).astype(
            self.compute_dtype)

        y6 = upsample2x_conv3x3(x_pad, self._w_folded, self._bias2,
                                out_dtype=x_nchw.dtype, tile_h=self.tile_h)
        # (N, H, 2, W, 2*Cout) -> (N, 2H, 2W, Cout): contiguous, zero-cost.
        y_nhwc = y6.reshape(n, 2 * h, 2 * w, self.out_channels)
        # NHWC -> NCHW required by the module contract (one output pass).
        return jnp.transpose(y_nhwc, (0, 3, 1, 2))


def _reference(x_nchw, weight_hwio, bias):
    x_up = jnp.repeat(jnp.repeat(x_nchw, 2, axis=2), 2, axis=3)
    y = jax.lax.conv_general_dilated(
        x_up, weight_hwio, window_strides=(1, 1), padding="SAME",
        dimension_numbers=("NCHW", "HWIO", "NCHW"))
    return y + bias[None, :, None, None]


if __name__ == "__main__":
    key = jax.random.PRNGKey(0)
    kx, kp = jax.random.split(key)

    N, C, H, W = 2, 4, 16, 16
    x = jax.random.normal(kx, (N, C, H, W), dtype=jnp.float32)

    # f32 compute path, tile_h=8 so the (N, H_tiles) grid is exercised.
    mod = UpsamplePallas(channels=C, use_conv=True, dims=2, key=kp,
                         compute_dtype=jnp.float32, tile_h=8)
    y = jax.block_until_ready(jax.jit(mod.__call__)(x))
    y_ref = _reference(x, mod.weight, mod.bias)
    assert y.shape == (N, C, 2 * H, 2 * W)
    # Tolerance accounts for TPU MXU matmul/conv precision differences between
    # the folded-weight Pallas path and the XLA conv reference.
    assert jnp.allclose(y, y_ref, atol=1e-2, rtol=1e-2)

    # bf16 compute path (per perf feedback): bf16 operands, f32 accumulation.
    mod_bf16 = UpsamplePallas(channels=C, use_conv=True, dims=2, key=kp,
                              compute_dtype=jnp.bfloat16)
    y16 = jax.block_until_ready(jax.jit(mod_bf16.__call__)(x))
    assert jnp.allclose(y16, y_ref, atol=5e-2, rtol=5e-2)

    # use_conv=False path (plain nearest x2).
    mod_nc = UpsamplePallas(channels=C, use_conv=False)
    y_nc = jax.block_until_ready(mod_nc(x))
    assert jnp.allclose(y_nc, jnp.repeat(jnp.repeat(x, 2, axis=2), 2, axis=3))

    print("KERNEL_OK")
</pallas_src>

<mosaic_0001>
module attributes {stable_mosaic.version = 11 : i64} {
  func.func @_upsample_conv3x3_kernel(%arg0: i32, %arg1: i32, %arg2: memref<1x18x18x4xf32, #tpu.memory_space<vmem>>, %arg3: memref<2x2x16x4xf32, #tpu.memory_space<vmem>>, %arg4: memref<1x8xf32, #tpu.memory_space<vmem>>, %arg5: memref<1x8x2x16x8xf32, #tpu.memory_space<vmem>>) attributes {dimension_semantics = [#tpu.dimension_semantics<parallel>, #tpu.dimension_semantics<parallel>], iteration_bounds = array<i64: 2, 2>, scalar_prefetch = 0 : i64, scratch_operands = 0 : i64, tpu.core_type = #tpu.core_type<tc>, window_params = [{transform_indices = @transform_0, window_bounds = array<i64: 1, 18, 18, 4>}, {pipeline_mode = #tpu.pipeline_mode<synchronous>, transform_indices = @transform_1, window_bounds = array<i64: 2, 2, 16, 4>}, {pipeline_mode = #tpu.pipeline_mode<synchronous>, transform_indices = @transform_2, window_bounds = array<i64: 1, 8>}, {transform_indices = @transform_3, window_bounds = array<i64: 1, 8, 2, 16, 8>}]} {
    %c8_i32 = arith.constant 8 : i32
    %0 = arith.muli %arg1, %c8_i32 : i32
    %1 = tpu.assume_multiple %0, 8 : i32
    %c0_i32 = arith.constant 0 : i32
    %2 = arith.addi %1, %c0_i32 : i32
    %c0 = arith.constant 0 : index
    %3 = arith.index_cast %2 : i32 to index
    %c0_0 = arith.constant 0 : index
    %c0_1 = arith.constant 0 : index
    %4 = vector.load %arg2[%c0, %3, %c0_0, %c0_1] : memref<1x18x18x4xf32, #tpu.memory_space<vmem>>, vector<1x8x18x4xf32>
    %5 = vector.shape_cast %4 : vector<1x8x18x4xf32> to vector<8x18x4xf32>
    %c0_i32_2 = arith.constant 0 : i32
    %6 = arith.addi %1, %c0_i32_2 : i32
    %c1_i32 = arith.constant 1 : i32
    %7 = arith.addi %6, %c1_i32 : i32
    %c0_3 = arith.constant 0 : index
    %8 = arith.index_cast %7 : i32 to index
    %c0_4 = arith.constant 0 : index
    %c0_5 = arith.constant 0 : index
    %9 = vector.load %arg2[%c0_3, %8, %c0_4, %c0_5] : memref<1x18x18x4xf32, #tpu.memory_space<vmem>>, vector<1x8x18x4xf32>
    %10 = vector.shape_cast %9 : vector<1x8x18x4xf32> to vector<8x18x4xf32>
    %11 = tpu.concatenate %5, %10 in 2 : vector<8x18x4xf32>, vector<8x18x4xf32> -> vector<8x18x8xf32>
    %12 = vector.extract_strided_slice %11 {offsets = [0, 0, 0], sizes = [8, 16, 8], strides = [1, 1, 1]} : vector<8x18x8xf32> to vector<8x16x8xf32>
    %13 = vector.extract_strided_slice %11 {offsets = [0, 1, 0], sizes = [8, 16, 8], strides = [1, 1, 1]} : vector<8x18x8xf32> to vector<8x16x8xf32>
    %14 = tpu.concatenate %12, %13 in 2 : vector<8x16x8xf32>, vector<8x16x8xf32> -> vector<8x16x16xf32>
    %c0_6 = arith.constant 0 : index
    %c0_7 = arith.constant 0 : index
    %c0_8 = arith.constant 0 : index
    %c0_9 = arith.constant 0 : index
    %15 = vector.load %arg3[%c0_6, %c0_7, %c0_8, %c0_9] : memref<2x2x16x4xf32, #tpu.memory_space<vmem>>, vector<1x1x16x4xf32>
    %16 = vector.shape_cast %15 : vector<1x1x16x4xf32> to vector<16x4xf32>
    "tpu.trace_start"() <{level = 10 : i32, message = "hwc,cf->hwf"}> : () -> ()
    %cst = arith.constant dense<0.000000e+00> : vector<8x16x4xf32>
    %17 = tpu.matmul %14, %16, %cst {dimension_numbers = #tpu.dot_dimension_numbers<[2], [0], [0, 1], [1], [0, 0, 0, 1, 1, 1], [], []>} : vector<8x16x16xf32>, vector<16x4xf32>, vector<8x16x4xf32> -> vector<8x16x4xf32>
    "tpu.trace_stop"() : () -> ()
    %18 = vector.extract_strided_slice %11 {offsets = [0, 1, 0], sizes = [8, 16, 8], strides = [1, 1, 1]} : vector<8x18x8xf32> to vector<8x16x8xf32>
    %19 = vector.extract_strided_slice %11 {offsets = [0, 2, 0], sizes = [8, 16, 8], strides = [1, 1, 1]} : vector<8x18x8xf32> to vector<8x16x8xf32>
    %20 = tpu.concatenate %18, %19 in 2 : vector<8x16x8xf32>, vector<8x16x8xf32> -> vector<8x16x16xf32>
    %c0_10 = arith.constant 0 : index
    %c1 = arith.constant 1 : index
    %c0_11 = arith.constant 0 : index
    %c0_12 = arith.constant 0 : index
    %21 = vector.load %arg3[%c0_10, %c1, %c0_11, %c0_12] : memref<2x2x16x4xf32, #tpu.memory_space<vmem>>, vector<1x1x16x4xf32>
    %22 = vector.shape_cast %21 : vector<1x1x16x4xf32> to vector<16x4xf32>
    "tpu.trace_start"() <{level = 10 : i32, message = "hwc,cf->hwf"}> : () -> ()
    %cst_13 = arith.constant dense<0.000000e+00> : vector<8x16x4xf32>
    %23 = tpu.matmul %20, %22, %cst_13 {dimension_numbers = #tpu.dot_dimension_numbers<[2], [0], [0, 1], [1], [0, 0, 0, 1, 1, 1], [], []>} : vector<8x16x16xf32>, vector<16x4xf32>, vector<8x16x4xf32> -> vector<8x16x4xf32>
    "tpu.trace_stop"() : () -> ()
    %24 = tpu.concatenate %17, %23 in 2 : vector<8x16x4xf32>, vector<8x16x4xf32> -> vector<8x16x8xf32>
    %c0_14 = arith.constant 0 : index
    %c0_15 = arith.constant 0 : index
    %25 = vector.load %arg4[%c0_14, %c0_15] : memref<1x8xf32, #tpu.memory_space<vmem>>, vector<1x8xf32>
    %26 = vector.shape_cast %25 : vector<1x8xf32> to vector<1x1x8xf32>
    %27 = vector.broadcast %26 : vector<1x1x8xf32> to vector<8x16x8xf32>
    %28 = arith.addf %24, %27 : vector<8x16x8xf32>
    %c0_16 = arith.constant 0 : index
    %c0_17 = arith.constant 0 : index
    %c0_18 = arith.constant 0 : index
    %c0_19 = arith.constant 0 : index
    %c0_20 = arith.constant 0 : index
    %29 = vector.load %arg5[%c0_16, %c0_17, %c0_18, %c0_19, %c0_20] : memref<1x8x2x16x8xf32, #tpu.memory_space<vmem>>, vector<1x8x1x16x8xf32>
    %30 = vector.shape_cast %29 : vector<1x8x1x16x8xf32> to vector<8x16x8xf32>
    %31 = vector.shape_cast %28 : vector<8x16x8xf32> to vector<1x8x1x16x8xf32>
    tpu.vector_store %arg5[%c0_16, %c0_17, %c0_18, %c0_19, %c0_20], %31 {strides = array<i32>} : memref<1x8x2x16x8xf32, #tpu.memory_space<vmem>>, vector<1x8x1x16x8xf32>,
    %c1_i32_21 = arith.constant 1 : i32
    %32 = arith.addi %1, %c1_i32_21 : i32
    %c0_22 = arith.constant 0 : index
    %33 = arith.index_cast %32 : i32 to index
    %c0_23 = arith.constant 0 : index
    %c0_24 = arith.constant 0 : index
    %34 = vector.load %arg2[%c0_22, %33, %c0_23, %c0_24] : memref<1x18x18x4xf32, #tpu.memory_space<vmem>>, vector<1x8x18x4xf32>
    %35 = vector.shape_cast %34 : vector<1x8x18x4xf32> to vector<8x18x4xf32>
    %c1_i32_25 = arith.constant 1 : i32
    %36 = arith.addi %1, %c1_i32_25 : i32
    %c1_i32_26 = arith.constant 1 : i32
    %37 = arith.addi %36, %c1_i32_26 : i32
    %c0_27 = arith.constant 0 : index
    %38 = arith.index_cast %37 : i32 to index
    %c0_28 = arith.constant 0 : index
    %c0_29 = arith.constant 0 : index
    %39 = vector.load %arg2[%c0_27, %38, %c0_28, %c0_29] : memref<1x18x18x4xf32, #tpu.memory_space<vmem>>, vector<1x8x18x4xf32>
    %40 = vector.shape_cast %39 : vector<1x8x18x4xf32> to vector<8x18x4xf32>
    %41 = tpu.concatenate %35, %40 in 2 : vector<8x18x4xf32>, vector<8x18x4xf32> -> vector<8x18x8xf32>
    %42 = vector.extract_strided_slice %41 {offsets = [0, 0, 0], sizes = [8, 16, 8], strides = [1, 1, 1]} : vector<8x18x8xf32> to vector<8x16x8xf32>
    %43 = vector.extract_strided_slice %41 {offsets = [0, 1, 0], sizes = [8, 16, 8], strides = [1, 1, 1]} : vector<8x18x8xf32> to vector<8x16x8xf32>
    %44 = tpu.concatenate %42, %43 in 2 : vector<8x16x8xf32>, vector<8x16x8xf32> -> vector<8x16x16xf32>
    %c1_30 = arith.constant 1 : index
    %c0_31 = arith.constant 0 : index
    %c0_32 = arith.constant 0 : index
    %c0_33 = arith.constant 0 : index
    %45 = vector.load %arg3[%c1_30, %c0_31, %c0_32, %c0_33] : memref<2x2x16x4xf32, #tpu.memory_space<vmem>>, vector<1x1x16x4xf32>
    %46 = vector.shape_cast %45 : vector<1x1x16x4xf32> to vector<16x4xf32>
    "tpu.trace_start"() <{level = 10 : i32, message = "hwc,cf->hwf"}> : () -> ()
    %cst_34 = arith.constant dense<0.000000e+00> : vector<8x16x4xf32>
    %47 = tpu.matmul %44, %46, %cst_34 {dimension_numbers = #tpu.dot_dimension_numbers<[2], [0], [0, 1], [1], [0, 0, 0, 1, 1, 1], [], []>} : vector<8x16x16xf32>, vector<16x4xf32>, vector<8x16x4xf32> -> vector<8x16x4xf32>
    "tpu.trace_stop"() : () -> ()
    %48 = vector.extract_strided_slice %41 {offsets = [0, 1, 0], sizes = [8, 16, 8], strides = [1, 1, 1]} : vector<8x18x8xf32> to vector<8x16x8xf32>
    %49 = vector.extract_strided_slice %41 {offsets = [0, 2, 0], sizes = [8, 16, 8], strides = [1, 1, 1]} : vector<8x18x8xf32> to vector<8x16x8xf32>
    %50 = tpu.concatenate %48, %49 in 2 : vector<8x16x8xf32>, vector<8x16x8xf32> -> vector<8x16x16xf32>
    %c1_35 = arith.constant 1 : index
    %c1_36 = arith.constant 1 : index
    %c0_37 = arith.constant 0 : index
    %c0_38 = arith.constant 0 : index
    %51 = vector.load %arg3[%c1_35, %c1_36, %c0_37, %c0_38] : memref<2x2x16x4xf32, #tpu.memory_space<vmem>>, vector<1x1x16x4xf32>
    %52 = vector.shape_cast %51 : vector<1x1x16x4xf32> to vector<16x4xf32>
    "tpu.trace_start"() <{level = 10 : i32, message = "hwc,cf->hwf"}> : () -> ()
    %cst_39 = arith.constant dense<0.000000e+00> : vector<8x16x4xf32>
    %53 = tpu.matmul %50, %52, %cst_39 {dimension_numbers = #tpu.dot_dimension_numbers<[2], [0], [0, 1], [1], [0, 0, 0, 1, 1, 1], [], []>} : vector<8x16x16xf32>, vector<16x4xf32>, vector<8x16x4xf32> -> vector<8x16x4xf32>
    "tpu.trace_stop"() : () -> ()
    %54 = tpu.concatenate %47, %53 in 2 : vector<8x16x4xf32>, vector<8x16x4xf32> -> vector<8x16x8xf32>
    %c0_40 = arith.constant 0 : index
    %c0_41 = arith.constant 0 : index
    %55 = vector.load %arg4[%c0_40, %c0_41] : memref<1x8xf32, #tpu.memory_space<vmem>>, vector<1x8xf32>
    %56 = vector.shape_cast %55 : vector<1x8xf32> to vector<1x1x8xf32>
    %57 = vector.broadcast %56 : vector<1x1x8xf32> to vector<8x16x8xf32>
    %58 = arith.addf %54, %57 : vector<8x16x8xf32>
    %c0_42 = arith.constant 0 : index
    %c0_43 = arith.constant 0 : index
    %c1_44 = arith.constant 1 : index
    %c0_45 = arith.constant 0 : index
    %c0_46 = arith.constant 0 : index
    %59 = vector.load %arg5[%c0_42, %c0_43, %c1_44, %c0_45, %c0_46] : memref<1x8x2x16x8xf32, #tpu.memory_space<vmem>>, vector<1x8x1x16x8xf32>
    %60 = vector.shape_cast %59 : vector<1x8x1x16x8xf32> to vector<8x16x8xf32>
    %61 = vector.shape_cast %58 : vector<8x16x8xf32> to vector<1x8x1x16x8xf32>
    tpu.vector_store %arg5[%c0_42, %c0_43, %c1_44, %c0_45, %c0_46], %61 {strides = array<i32>} : memref<1x8x2x16x8xf32, #tpu.memory_space<vmem>>, vector<1x8x1x16x8xf32>,
    return
  }
  func.func @transform_0(%arg0: i32, %arg1: i32) -> (i32, i32, i32, i32) {
    %c0_i32 = arith.constant 0 : i32
    %c0_i32_0 = arith.constant 0 : i32
    %c0_i32_1 = arith.constant 0 : i32
    %c0_i32_2 = arith.constant 0 : i32
    return %arg0, %c0_i32, %c0_i32_0, %c0_i32_1 : i32, i32, i32, i32
  }
  func.func @transform_1(%arg0: i32, %arg1: i32) -> (i32, i32, i32, i32) {
    %c0_i32 = arith.constant 0 : i32
    %c0_i32_0 = arith.constant 0 : i32
    %c0_i32_1 = arith.constant 0 : i32
    %c0_i32_2 = arith.constant 0 : i32
    %c0_i32_3 = arith.constant 0 : i32
    return %c0_i32, %c0_i32_0, %c0_i32_1, %c0_i32_2 : i32, i32, i32, i32
  }
  func.func @transform_2(%arg0: i32, %arg1: i32) -> (i32, i32) {
    %c0_i32 = arith.constant 0 : i32
    %c0_i32_0 = arith.constant 0 : i32
    %c0_i32_1 = arith.constant 0 : i32
    return %c0_i32, %c0_i32_0 : i32, i32
  }
  func.func @transform_3(%arg0: i32, %arg1: i32) -> (i32, i32, i32, i32, i32) {
    %c0_i32 = arith.constant 0 : i32
    %c0_i32_0 = arith.constant 0 : i32
    %c0_i32_1 = arith.constant 0 : i32
    %c0_i32_2 = arith.constant 0 : i32
    return %arg0, %arg1, %c0_i32, %c0_i32_0, %c0_i32_1 : i32, i32, i32, i32, i32
  }
}

</mosaic_0001>

<llo_original>
// kernel: a_call__.1
$region0: #{a_call__.1}
  #allocation0 [shape = 'u32[]', space=smem, size = 0x4, offset = 0x4, fixed_abs, tag = 'smem constant byte address 0x4 - core index']
  #allocation1 [shape = 'u32[144,128]{1,0:T(1,128)}', space=vmem, size = 0x12000, scoped, tag = 'internal scratch']
  %s0 = inlined_call_operand.vmem [shape: f32[2,18,18,4], index: 0, kind: input, shape index: {}]
  %s1 = inlined_call_operand.vmem [shape: f32[2,2,16,4], index: 1, kind: input, shape index: {}]
  %s2 = inlined_call_operand.vmem [shape: f32[1,8], index: 2, kind: input, shape index: {}]
  %s3 = inlined_call_operand.vmem [shape: f32[2,16,2,16,8], index: 3, kind: output, shape index: {}]
  %s4 = sld [smem:[#allocation0]]
  $region45: #{a_call__.1} parent=0
    _
  %s6 = ssub.s32 1, %s4
  %s7 = scalar_select 0, %s6, %s4
  loop: start=0, step=1, limit=6
  $region2: #{a_call__.1} parent=0 // loop_pre_header
    _
  $region3: #{a_call__.1} parent=0 // loop_header
    %s9 = sphi 0, %s13
    %p10 = scmp.ge.s32.totalorder %s9, 6
    %s16 = sphi 0, %s28
    %s17 = sphi 0, %s24
    %s18 = sphi 0, %s16
    %s19 = sphi 0, %s17
    %s20 = sphi 0, %s18
    %s21 = sphi 0, %s19
    %s31 = sphi 0, %s33
    %s34 = sphi 0, %s31
    %s35 = sphi 0, %s34
    %s51 = sphi 0, %s35
    %s55 = sphi 0, %s55
    %s57 = sphi 0, %s55
    %s58 = sphi 0, %s57
    %s72 = sphi 0, %s58
    %s76 = sphi 0, %s76
    %s78 = sphi 0, %s76
    %s79 = sphi 0, %s78
    %s93 = sphi 0, %s79
    %s101 = sphi 0, %s103
    %s104 = sphi 0, %s101
    %s105 = sphi 0, %s104
    %s121 = sphi 0, %s105
  $region4: #{a_call__.1} parent=0 // loop_header_branch
    %12 = sbr.rel (%p10) target = $region8
  $region5: #{a_call__.1} parent=0 // loop_body
    %s14 = ssub.s32 %s9, 1
    %s15 = ssub.s32 %s9, 2
    %s22 = sadd.s32 1, %s17
    %p23 = scmp.ge.s32.totalorder %s22, 2
    %s24 = scalar_select %p23, 0, %s22
    %s25 = sadd.s32 1, %s16
    %s26 = scalar_select %p23, %s25, %s16
    %p27 = scmp.ge.s32.totalorder %s26, 2
    %s28 = scalar_select %p27, 0, %s26
    %s29 = ssub.s32 %s16, %s28
    %p30 = scmp.eq.s32.totalorder %s29, 0
    %s32 = sadd.s32 %s31, 1
    %s33 = scalar_select %p30, %s31, %s32
    %p36 = pneg %p30
    %p37 = scmp.eq.s32.totalorder %s9, 3
    %p38 = por %p36, %p37
    %p39 = scmp.ne.s32.totalorder %s31, %s34
    %p40 = scmp.eq.s32.totalorder %s9, 0
    %p41 = por %p39, %p40
    %p42 = scmp.ne.s32.totalorder %s31, %s34
    %p43 = scmp.eq.s32.totalorder %s14, 3
    %p44 = por %p42, %p43
    %p45 = scmp.ne.s32.totalorder %s34, %s35
    %p46 = scmp.eq.s32.totalorder %s14, 0
    %p47 = por %p45, %p46
    %p48 = scmp.ne.s32.totalorder %s34, %s35
    %p49 = scmp.eq.s32.totalorder %s15, 3
    %p50 = por %p48, %p49
    %p52 = scmp.ne.s32.totalorder %s35, %s51
    %p53 = scmp.eq.s32.totalorder %s15, 0
    %p54 = por %p52, %p53
    %s56 = sadd.s32 %s55, 1
    %p59 = scmp.eq.s32.totalorder %s9, 3
    %p60 = scmp.ne.s32.totalorder %s55, %s57
    %p61 = scmp.eq.s32.totalorder %s9, 0
    %p62 = por %p60, %p61
    %p63 = scmp.ne.s32.totalorder %s55, %s57
    %p64 = scmp.eq.s32.totalorder %s14, 3
    %p65 = por %p63, %p64
    %p66 = scmp.ne.s32.totalorder %s57, %s58
    %p67 = scmp.eq.s32.totalorder %s14, 0
    %p68 = por %p66, %p67
    %p69 = scmp.ne.s32.totalorder %s57, %s58
    %p70 = scmp.eq.s32.totalorder %s15, 3
    %p71 = por %p69, %p70
    %p73 = scmp.ne.s32.totalorder %s58, %s72
    %p74 = scmp.eq.s32.totalorder %s15, 0
    %p75 = por %p73, %p74
    %s77 = sadd.s32 %s76, 1
    %p80 = scmp.eq.s32.totalorder %s9, 3
    %p81 = scmp.ne.s32.totalorder %s76, %s78
    %p82 = scmp.eq.s32.totalorder %s9, 0
    %p83 = por %p81, %p82
    %p84 = scmp.ne.s32.totalorder %s76, %s78
    %p85 = scmp.eq.s32.totalorder %s14, 3
    %p86 = por %p84, %p85
    %p87 = scmp.ne.s32.totalorder %s78, %s79
    %p88 = scmp.eq.s32.totalorder %s14, 0
    %p89 = por %p87, %p88
    %p90 = scmp.ne.s32.totalorder %s78, %s79
    %p91 = scmp.eq.s32.totalorder %s15, 3
    %p92 = por %p90, %p91
    %p94 = scmp.ne.s32.totalorder %s79, %s93
    %p95 = scmp.eq.s32.totalorder %s15, 0
    %p96 = por %p94, %p95
    %s97 = ssub.s32 %s16, %s28
    %s98 = ssub.s32 %s17, %s24
    %s99 = sor.u32 %s97, %s98
    %p100 = scmp.eq.s32.totalorder %s99, 0
    %s102 = sadd.s32 %s101, 1
    %s103 = scalar_select %p100, %s101, %s102
    %p106 = pneg %p100
    %p107 = scmp.eq.s32.totalorder %s9, 3
    %p108 = por %p106, %p107
    %p109 = scmp.ne.s32.totalorder %s101, %s104
    %p110 = scmp.eq.s32.totalorder %s9, 0
    %p111 = por %p109, %p110
    %p112 = scmp.ne.s32.totalorder %s101, %s104
    %p113 = scmp.eq.s32.totalorder %s14, 3
    %p114 = por %p112, %p113
    %p115 = scmp.ne.s32.totalorder %s104, %s105
    %p116 = scmp.eq.s32.totalorder %s14, 0
    %p117 = por %p115, %p116
    %p118 = scmp.ne.s32.totalorder %s104, %s105
    %p119 = scmp.eq.s32.totalorder %s15, 3
    %p120 = por %p118, %p119
    %p122 = scmp.ne.s32.totalorder %s105, %s121
    %p123 = scmp.eq.s32.totalorder %s15, 0
    %p124 = por %p122, %p123
    %p125 = scmp.le.s32.totalorder 1, %s9
    %p126 = scmp.lt.s32.totalorder %s9, 5
    %p127 = pnand %p125, %p126
    %p128 = pneg %p127
    // Predicated region
    $region9: #{a_call__.1} parent=5 // pred_check
      _
    $region10: #{a_call__.1} parent=5 // pred_check_branch
      %130 = sbr.rel (%p127) target = $region12
    $region11: #{a_call__.1} parent=5 // pred_region
      %s131 = ssub.s32 %s9, 1
      // Predicated region
      $region13: #{a_call__.1} parent=11 // pred_check
        %p132 = pneg %p68
      $region14: #{a_call__.1} parent=11 // pred_check_branch
        %134 = sbr.rel (%p132) target = $region16
      $region15: #{a_call__.1} parent=11 // pred_region
        _
      $region16: #{a_call__.1} parent=11 // pred_fallthru
        _
      // Predicated region
      $region17: #{a_call__.1} parent=11 // pred_check
        %p135 = pneg %p89
      $region18: #{a_call__.1} parent=11 // pred_check_branch
        %137 = sbr.rel (%p135) target = $region20
      $region19: #{a_call__.1} parent=11 // pred_region
        _
      $region20: #{a_call__.1} parent=11 // pred_fallthru
        _
    $region12: #{a_call__.1} parent=5 // pred_fallthru
      _
    %p138 = scmp.lt.s32.totalorder %s9, 4
    // Predicated region
    $region21: #{a_call__.1} parent=5 // pred_check
      %p139 = pneg %p138
    $region22: #{a_call__.1} parent=5 // pred_check_branch
      %141 = sbr.rel (%p139) target = $region24
    $region23: #{a_call__.1} parent=5 // pred_region
      // Predicated region
      $region25: #{a_call__.1} parent=23 // pred_check
        %p142 = pneg %p41
      $region26: #{a_call__.1} parent=23 // pred_check_branch
        %144 = sbr.rel (%p142) target = $region28
      $region27: #{a_call__.1} parent=23 // pred_region
        %p145 = scmp.lt.s32.totalorder %s16, 1
        %s146 = scalar_select %p145, %s16, 1
        %s147 = smul.addr %s146, 54
        %s148 = smul.addr %s147, 8
        %s149 = scalar_lea.vmem %s0, %s148
      $region28: #{a_call__.1} parent=23 // pred_fallthru
        _
    $region24: #{a_call__.1} parent=5 // pred_fallthru
      _
    %p150 = scmp.le.s32.totalorder 1, %s9
    %p151 = scmp.lt.s32.totalorder %s9, 5
    %p152 = pnand %p150, %p151
    %p153 = pneg %p152
    // Predicated region
    $region29: #{a_call__.1} parent=5 // pred_check
      _
    $region30: #{a_call__.1} parent=5 // pred_check_branch
      %155 = sbr.rel (%p152) target = $region32
    $region31: #{a_call__.1} parent=5 // pred_region
      %s156 = ssub.s32 %s9, 1
      %p157 = scmp.lt.s32.totalorder %s18, 1
      %s158 = scalar_select %p157, %s18, 1
      %s159 = smul.addr %s158, 54
      %s160 = smul.addr %s159, 8
      %s161 = scalar_lea.vmem %s0, %s160
      %p162 = pneg %p47
      %p163 = pneg %p44
      %p164 = pneg %p68
      %p165 = pneg %p65
      %p166 = pneg %p89
      %p167 = pneg %p86
      %p168 = pneg %p117
      %p169 = pneg %p114
      %s170 = smul.u32 8, %s19
      %p171 = scmp.lt.s32.totalorder %s18, 1
      %s172 = scalar_select %p171, %s18, 1
      %p173 = scmp.lt.s32.totalorder %s170, 15
      %s174 = scalar_select %p173, %s170, 15
      %s175 = smul.addr %s174, 4
      %s176 = smul.addr %s172, 64
      %s177 = sadd.s32 %s175, %s176
      %s178 = smul.addr %s177, 8
      %s179 = scalar_lea.vmem %s3, %s178
      %p180 = scmp.lt.s32.totalorder %s18, 1
      %s181 = scalar_select %p180, %s18, 1
      %s182 = smul.addr %s181, 54
      %s183 = smul.addr %s182, 8
      %s184 = scalar_lea.vmem %s0, %s183
      %s185 = smul.u32 8, %s19
      %p186 = scmp.lt.s32.totalorder %s18, 1
      %s187 = scalar_select %p186, %s18, 1
      %p188 = scmp.lt.s32.totalorder %s185, 15
      %s189 = scalar_select %p188, %s185, 15
      %s190 = smul.addr %s189, 4
      %s191 = smul.addr %s187, 64
      %s192 = sadd.s32 %s190, %s191
      %s193 = smul.addr %s192, 8
      %s194 = scalar_lea.vmem %s3, %s193
      %s195 = smul.u32 8, %s19
      %s196 = smul.u32 %s19, 8
      %s197 = smul.u32 %s196, 24
      %s198 = scalar_lea.vmem %s184, %s197
      %v199 = vld [vmem:[%s198] sm:$0xff]
      %v200 = vld [vmem:[%s198 + $0x8] sm:$0xff]
      %v201 = vld [vmem:[%s198 + $0x10] sm:$0x3]
      %v202 = vld [vmem:[%s198 + $0x18] sm:$0xff]
      %v203 = vld [vmem:[%s198 + $0x20] sm:$0xff]
      %v204 = vld [vmem:[%s198 + $0x28] sm:$0x3]
      %v205 = vld [vmem:[%s198 + $0x30] sm:$0xff]
      %v206 = vld [vmem:[%s198 + $0x38] sm:$0xff]
      %v207 = vld [vmem:[%s198 + $0x40] sm:$0x3]
      %v208 = vld [vmem:[%s198 + $0x48] sm:$0xff]
      %v209 = vld [vmem:[%s198 + $0x50] sm:$0xff]
      %v210 = vld [vmem:[%s198 + $0x58] sm:$0x3]
      %v211 = vld [vmem:[%s198 + $0x60] sm:$0xff]
      %v212 = vld [vmem:[%s198 + $0x68] sm:$0xff]
      %v213 = vld [vmem:[%s198 + $0x70] sm:$0x3]
      %v214 = vld [vmem:[%s198 + $0x78] sm:$0xff]
      %v215 = vld [vmem:[%s198 + $0x80] sm:$0xff]
      %v216 = vld [vmem:[%s198 + $0x88] sm:$0x3]
      %v217 = vld [vmem:[%s198 + $0x90] sm:$0xff]
      %v218 = vld [vmem:[%s198 + $0x98] sm:$0xff]
      %v219 = vld [vmem:[%s198 + $0xa0] sm:$0x3]
      %v220 = vld [vmem:[%s198 + $0xa8] sm:$0xff]
      %v221 = vld [vmem:[%s198 + $0xb0] sm:$0xff]
      %v222 = vld [vmem:[%s198 + $0xb8] sm:$0x3]
      %s223 = sadd.s32 %s196, 1
      %s224 = smul.u32 %s223, 24
      %s225 = scalar_lea.vmem %s184, %s224
      %v226 = vld [vmem:[%s225] sm:$0xff]
      %v227 = vld [vmem:[%s225 + $0x8] sm:$0xff]
      %v228 = vld [vmem:[%s225 + $0x10] sm:$0x3]
      %v229 = vld [vmem:[%s225 + $0x18] sm:$0xff]
      %v230 = vld [vmem:[%s225 + $0x20] sm:$0xff]
      %v231 = vld [vmem:[%s225 + $0x28] sm:$0x3]
      %v232 = vld [vmem:[%s225 + $0x30] sm:$0xff]
      %v233 = vld [vmem:[%s225 + $0x38] sm:$0xff]
      %v234 = vld [vmem:[%s225 + $0x40] sm:$0x3]
      %v235 = vld [vmem:[%s225 + $0x48] sm:$0xff]
      %v236 = vld [vmem:[%s225 + $0x50] sm:$0xff]
      %v237 = vld [vmem:[%s225 + $0x58] sm:$0x3]
      %v238 = vld [vmem:[%s225 + $0x60] sm:$0xff]
      %v239 = vld [vmem:[%s225 + $0x68] sm:$0xff]
      %v240 = vld [vmem:[%s225 + $0x70] sm:$0x3]
      %v241 = vld [vmem:[%s225 + $0x78] sm:$0xff]
      %v242 = vld [vmem:[%s225 + $0x80] sm:$0xff]
      %v243 = vld [vmem:[%s225 + $0x88] sm:$0x3]
      %v244 = vld [vmem:[%s225 + $0x90] sm:$0xff]
      %v245 = vld [vmem:[%s225 + $0x98] sm:$0xff]
      %v246 = vld [vmem:[%s225 + $0xa0] sm:$0x3]
      %v247 = vld [vmem:[%s225 + $0xa8] sm:$0xff]
      %v248 = vld [vmem:[%s225 + $0xb0] sm:$0xff]
      %v249 = vld [vmem:[%s225 + $0xb8] sm:$0x3]
      %274 = vrot.lane.b32.xlu0 %v226, 4
      %v275 = vpop.permute.xlu0 %274
      %276 = vrot.lane.b32.xlu0 %v227, 4
      %v277 = vpop.permute.xlu0 %276
      %278 = vrot.lane.b32.xlu0 %v228, 4
      %v279 = vpop.permute.xlu0 %278
      %280 = vrot.lane.b32.xlu0 %v229, 4
      %v281 = vpop.permute.xlu0 %280
      %282 = vrot.lane.b32.xlu0 %v230, 4
      %v283 = vpop.permute.xlu0 %282
      %284 = vrot.lane.b32.xlu0 %v231, 4
      %v285 = vpop.permute.xlu0 %284
      %286 = vrot.lane.b32.xlu0 %v232, 4
      %v287 = vpop.permute.xlu0 %286
      %288 = vrot.lane.b32.xlu0 %v233, 4
      %v289 = vpop.permute.xlu0 %288
      %290 = vrot.lane.b32.xlu0 %v234, 4
      %v291 = vpop.permute.xlu0 %290
      %292 = vrot.lane.b32.xlu0 %v235, 4
      %v293 = vpop.permute.xlu0 %292
      %294 = vrot.lane.b32.xlu0 %v236, 4
      %v295 = vpop.permute.xlu0 %294
      %296 = vrot.lane.b32.xlu0 %v237, 4
      %v297 = vpop.permute.xlu0 %296
      %298 = vrot.lane.b32.xlu0 %v238, 4
      %v299 = vpop.permute.xlu0 %298
      %300 = vrot.lane.b32.xlu0 %v239, 4
      %v301 = vpop.permute.xlu0 %300
      %302 = vrot.lane.b32.xlu0 %v240, 4
      %v303 = vpop.permute.xlu0 %302
      %304 = vrot.lane.b32.xlu0 %v241, 4
      %v305 = vpop.permute.xlu0 %304
      %306 = vrot.lane.b32.xlu0 %v242, 4
      %v307 = vpop.permute.xlu0 %306
      %308 = vrot.lane.b32.xlu0 %v243, 4
      %v309 = vpop.permute.xlu0 %308
      %310 = vrot.lane.b32.xlu0 %v244, 4
      %v311 = vpop.permute.xlu0 %310
      %312 = vrot.lane.b32.xlu0 %v245, 4
      %v313 = vpop.permute.xlu0 %312
      %314 = vrot.lane.b32.xlu0 %v246, 4
      %v315 = vpop.permute.xlu0 %314
      %316 = vrot.lane.b32.xlu0 %v247, 4
      %v317 = vpop.permute.xlu0 %316
      %318 = vrot.lane.b32.xlu0 %v248, 4
      %v319 = vpop.permute.xlu0 %318
      %320 = vrot.lane.b32.xlu0 %v249, 4
      %v321 = vpop.permute.xlu0 %320
      %vm346 = vcmask 31744
      %v347 = vsel %vm346, %v199, %v275
      %v348 = vsel %vm346, %v200, %v277
      %v349 = vsel %vm346, %v201, %v279
      %v350 = vsel %vm346, %v202, %v281
      %v351 = vsel %vm346, %v203, %v283
      %v352 = vsel %vm346, %v204, %v285
      %v353 = vsel %vm346, %v205, %v287
      %v354 = vsel %vm346, %v206, %v289
      %v355 = vsel %vm346, %v207, %v291
      %v356 = vsel %vm346, %v208, %v293
      %v357 = vsel %vm346, %v209, %v295
      %v358 = vsel %vm346, %v210, %v297
      %v359 = vsel %vm346, %v211, %v299
      %v360 = vsel %vm346, %v212, %v301
      %v361 = vsel %vm346, %v213, %v303
      %v362 = vsel %vm346, %v214, %v305
      %v363 = vsel %vm346, %v215, %v307
      %v364 = vsel %vm346, %v216, %v309
      %v365 = vsel %vm346, %v217, %v311
      %v366 = vsel %vm346, %v218, %v313
      %v367 = vsel %vm346, %v219, %v315
      %v368 = vsel %vm346, %v220, %v317
      %v369 = vsel %vm346, %v221, %v319
      %v370 = vsel %vm346, %v222, %v321
      %vm395 = vcmask 1046528
      %v396 = vrot.slane %v347, 1
      %v397 = vrot.slane %v348, 1
      %v398 = vsel %vm395, %v396, %v397
      %v399 = vrot.slane %v349, 1
      %v400 = vsel %vm395, %v397, %v399
      %v401 = vrot.slane %v350, 1
      %v402 = vrot.slane %v351, 1
      %v403 = vsel %vm395, %v401, %v402
      %v404 = vrot.slane %v352, 1
      %v405 = vsel %vm395, %v402, %v404
      %v406 = vrot.slane %v353, 1
      %v407 = vrot.slane %v354, 1
      %v408 = vsel %vm395, %v406, %v407
      %v409 = vrot.slane %v355, 1
      %v410 = vsel %vm395, %v407, %v409
      %v411 = vrot.slane %v356, 1
      %v412 = vrot.slane %v357, 1
      %v413 = vsel %vm395, %v411, %v412
      %v414 = vrot.slane %v358, 1
      %v415 = vsel %vm395, %v412, %v414
      %v416 = vrot.slane %v359, 1
      %v417 = vrot.slane %v360, 1
      %v418 = vsel %vm395, %v416, %v417
      %v419 = vrot.slane %v361, 1
      %v420 = vsel %vm395, %v417, %v419
      %v421 = vrot.slane %v362, 1
      %v422 = vrot.slane %v363, 1
      %v423 = vsel %vm395, %v421, %v422
      %v424 = vrot.slane %v364, 1
      %v425 = vsel %vm395, %v422, %v424
      %v426 = vrot.slane %v365, 1
      %v427 = vrot.slane %v366, 1
      %v428 = vsel %vm395, %v426, %v427
      %v429 = vrot.slane %v367, 1
      %v430 = vsel %vm395, %v427, %v429
      %v431 = vrot.slane %v368, 1
      %v432 = vrot.slane %v369, 1
      %v433 = vsel %vm395, %v431, %v432
      %v434 = vrot.slane %v370, 1
      %v435 = vsel %vm395, %v432, %v434
      %436 = vrot.lane.b32.xlu0 %v398, 8
      %v437 = vpop.permute.xlu0 %436
      %438 = vrot.lane.b32.xlu0 %v400, 8
      %v439 = vpop.permute.xlu0 %438
      %440 = vrot.lane.b32.xlu0 %v403, 8
      %v441 = vpop.permute.xlu0 %440
      %442 = vrot.lane.b32.xlu0 %v405, 8
      %v443 = vpop.permute.xlu0 %442
      %444 = vrot.lane.b32.xlu0 %v408, 8
      %v445 = vpop.permute.xlu0 %444
      %446 = vrot.lane.b32.xlu0 %v410, 8
      %v447 = vpop.permute.xlu0 %446
      %448 = vrot.lane.b32.xlu0 %v413, 8
      %v449 = vpop.permute.xlu0 %448
      %450 = vrot.lane.b32.xlu0 %v415, 8
      %v451 = vpop.permute.xlu0 %450
      %452 = vrot.lane.b32.xlu0 %v418, 8
      %v453 = vpop.permute.xlu0 %452
      %454 = vrot.lane.b32.xlu0 %v420, 8
      %v455 = vpop.permute.xlu0 %454
      %456 = vrot.lane.b32.xlu0 %v423, 8
      %v457 = vpop.permute.xlu0 %456
      %458 = vrot.lane.b32.xlu0 %v425, 8
      %v459 = vpop.permute.xlu0 %458
      %460 = vrot.lane.b32.xlu0 %v428, 8
      %v461 = vpop.permute.xlu0 %460
      %462 = vrot.lane.b32.xlu0 %v430, 8
      %v463 = vpop.permute.xlu0 %462
      %464 = vrot.lane.b32.xlu0 %v433, 8
      %v465 = vpop.permute.xlu0 %464
      %466 = vrot.lane.b32.xlu0 %v435, 8
      %v467 = vpop.permute.xlu0 %466
      %vm484 = vcmask 64512
      %v485 = vsel %vm484, %v347, %v437
      %v486 = vsel %vm484, %v348, %v439
      %v487 = vsel %vm484, %v350, %v441
      %v488 = vsel %vm484, %v351, %v443
      %v489 = vsel %vm484, %v353, %v445
      %v490 = vsel %vm484, %v354, %v447
      %v491 = vsel %vm484, %v356, %v449
      %v492 = vsel %vm484, %v357, %v451
      %v493 = vsel %vm484, %v359, %v453
      %v494 = vsel %vm484, %v360, %v455
      %v495 = vsel %vm484, %v362, %v457
      %v496 = vsel %vm484, %v363, %v459
      %v497 = vsel %vm484, %v365, %v461
      %v498 = vsel %vm484, %v366, %v463
      %v499 = vsel %vm484, %v368, %v465
      %v500 = vsel %vm484, %v369, %v467
      %v501 = vld [vmem:[%s1] sm:$0xff]
      %v502 = vld [vmem:[%s1 + $0x8] sm:$0xff]
      %vm503 = vcmask 130048
      %v505 = vsel %vm503, %v485, 0
      %v508 = vsel %vm503, %v486, 0
      %v511 = vsel %vm503, %v487, 0
      %v514 = vsel %vm503, %v488, 0
      %v517 = vsel %vm503, %v489, 0
      %v520 = vsel %vm503, %v490, 0
      %v523 = vsel %vm503, %v491, 0
      %v526 = vsel %vm503, %v492, 0
      %v529 = vsel %vm503, %v493, 0
      %v532 = vsel %vm503, %v494, 0
      %v535 = vsel %vm503, %v495, 0
      %v538 = vsel %vm503, %v496, 0
      %v541 = vsel %vm503, %v497, 0
      %v544 = vsel %vm503, %v498, 0
      %v547 = vsel %vm503, %v499, 0
      %v550 = vsel %vm503, %v500, 0
      %552 = vmatprep.subr.mxu0 0.0
      %553 = vmatpush1.msra.mxu0 %v501
      %554 = vmatprep.subr.mxu0 0.0
      %555 = vmatpush1.msra.mxu0 %v502
      %556 = vmatprep.subr.mxu0 0.0
      %557 = vmatpush1.msra.mxu0 0.0
      %558 = vmatprep.subr.mxu0 0.0
      %559 = vmatpush1.msra.mxu0 0.0
      %560 = vmatprep.subr.mxu0 0.0
      %561 = vmatpush1.msra.mxu0 0.0
      %562 = vmatprep.subr.mxu0 0.0
      %563 = vmatpush1.msra.mxu0 0.0
      %564 = vmatprep.subr.mxu0 0.0
      %565 = vmatpush1.msra.mxu0 0.0
      %566 = vmatprep.subr.mxu0 0.0
      %567 = vmatpush1.msra.mxu0 0.0
      %568 = vmatprep.subr.mxu0 0.0
      %569 = vmatpush1.msra.mxu0 0.0
      %570 = vmatprep.subr.mxu0 0.0
      %571 = vmatpush1.msra.mxu0 0.0
      %572 = vmatprep.subr.mxu0 0.0
      %573 = vmatpush1.msra.mxu0 0.0
      %574 = vmatprep.subr.mxu0 0.0
      %575 = vmatpush1.msra.mxu0 0.0
      %576 = vmatprep.subr.mxu0 0.0
      %577 = vmatpush1.msra.mxu0 0.0
      %578 = vmatprep.subr.mxu0 0.0
      %579 = vmatpush1.msra.mxu0 0.0
      %580 = vmatprep.subr.mxu0 0.0
      %581 = vmatpush1.msra.mxu0 0.0
      %582 = vmatprep.subr.mxu0 0.0
      %583 = vmatpush1.msra.mxu0 0.0
      %584 = vmatprep.subr.mxu0 0.0
      %585 = vmatpush1.msra.mxu0 0.0
      %586 = vmatprep.subr.mxu0 0.0
      %587 = vmatpush1.msra.mxu0 0.0
      %588 = vmatprep.subr.mxu0 0.0
      %589 = vmatpush1.msra.mxu0 0.0
      %590 = vmatprep.subr.mxu0 0.0
      %591 = vmatpush1.msra.mxu0 0.0
      %592 = vmatprep.subr.mxu0 0.0
      %593 = vmatpush1.msra.mxu0 0.0
      %594 = vmatprep.subr.mxu0 0.0
      %595 = vmatpush1.msra.mxu0 0.0
      %596 = vmatprep.subr.mxu0 0.0
      %597 = vmatpush1.msra.mxu0 0.0
      %598 = vmatprep.subr.mxu0 0.0
      %599 = vmatpush1.msra.mxu0 0.0
      %600 = vmatprep.subr.mxu0 0.0
      %601 = vmatpush1.msra.mxu0 0.0
      %602 = vmatprep.subr.mxu0 0.0
      %603 = vmatpush1.msra.mxu0 0.0
      %604 = vmatprep.subr.mxu0 0.0
      %605 = vmatpush1.msra.mxu0 0.0
      %606 = vmatprep.subr.mxu0 0.0
      %607 = vmatpush1.msra.mxu0 0.0
      %608 = vmatprep.subr.mxu0 0.0
      %609 = vmatpush1.msra.mxu0 0.0
      %610 = vmatprep.subr.mxu0 0.0
      %611 = vmatpush1.msra.mxu0 0.0
      %612 = vmatprep.subr.mxu0 0.0
      %613 = vmatpush1.msra.mxu0 0.0
      %614 = vmatprep.subr.mxu0 0.0
      %615 = vmatpush1.msra.mxu0 0.0
      %616 = vmatprep.mubr.f32.mxu0 0.0
      %617 = vmatmul.mubr.f32.gmra.mrb[0].mxu0 %v505
      %v618 = vpop.f32.mrb[0].mxu0
      %v619 = vadd.f32 0.0, %v618
      %v620 = vpop.f32.mrb[0].mxu0
      %621 = vmatprep.mubr.f32.mxu0 0.0
      %622 = vmatmul.mubr.f32.gmra.mrb[0].mxu0 %v508
      %v623 = vpop.f32.mrb[0].mxu0
      %v624 = vadd.f32 0.0, %v623
      %v625 = vpop.f32.mrb[0].mxu0
      %626 = vmatprep.mubr.f32.mxu0 0.0
      %627 = vmatmul.mubr.f32.gmra.mrb[0].mxu0 %v511
      %v628 = vpop.f32.mrb[0].mxu0
      %v629 = vadd.f32 0.0, %v628
      %v630 = vpop.f32.mrb[0].mxu0
      %631 = vmatprep.mubr.f32.mxu0 0.0
      %632 = vmatmul.mubr.f32.gmra.mrb[0].mxu0 %v514
      %v633 = vpop.f32.mrb[0].mxu0
      %v634 = vadd.f32 0.0, %v633
      %v635 = vpop.f32.mrb[0].mxu0
      %636 = vmatprep.mubr.f32.mxu0 0.0
      %637 = vmatmul.mubr.f32.gmra.mrb[0].mxu0 %v517
      %v638 = vpop.f32.mrb[0].mxu0
      %v639 = vadd.f32 0.0, %v638
      %v640 = vpop.f32.mrb[0].mxu0
      %641 = vmatprep.mubr.f32.mxu0 0.0
      %642 = vmatmul.mubr.f32.gmra.mrb[0].mxu0 %v520
      %v643 = vpop.f32.mrb[0].mxu0
      %v644 = vadd.f32 0.0, %v643
      %v645 = vpop.f32.mrb[0].mxu0
      %646 = vmatprep.mubr.f32.mxu0 0.0
      %647 = vmatmul.mubr.f32.gmra.mrb[0].mxu0 %v523
      %v648 = vpop.f32.mrb[0].mxu0
      %v649 = vadd.f32 0.0, %v648
      %v650 = vpop.f32.mrb[0].mxu0
      %651 = vmatprep.mubr.f32.mxu0 0.0
      %652 = vmatmul.mubr.f32.gmra.mrb[0].mxu0 %v526
      %v653 = vpop.f32.mrb[0].mxu0
      %v654 = vadd.f32 0.0, %v653
      %v655 = vpop.f32.mrb[0].mxu0
      %656 = vmatprep.mubr.f32.mxu0 0.0
      %657 = vmatmul.mubr.f32.gmra.mrb[0].mxu0 %v529
      %v658 = vpop.f32.mrb[0].mxu0
      %v659 = vadd.f32 0.0, %v658
      %v660 = vpop.f32.mrb[0].mxu0
      %661 = vmatprep.mubr.f32.mxu0 0.0
      %662 = vmatmul.mubr.f32.gmra.mrb[0].mxu0 %v532
      %v663 = vpop.f32.mrb[0].mxu0
      %v664 = vadd.f32 0.0, %v663
      %v665 = vpop.f32.mrb[0].mxu0
      %666 = vmatprep.mubr.f32.mxu0 0.0
      %667 = vmatmul.mubr.f32.gmra.mrb[0].mxu0 %v535
      %v668 = vpop.f32.mrb[0].mxu0
      %v669 = vadd.f32 0.0, %v668
      %v670 = vpop.f32.mrb[0].mxu0
      %671 = vmatprep.mubr.f32.mxu0 0.0
      %672 = vmatmul.mubr.f32.gmra.mrb[0].mxu0 %v538
      %v673 = vpop.f32.mrb[0].mxu0
      %v674 = vadd.f32 0.0, %v673
      %v675 = vpop.f32.mrb[0].mxu0
      %676 = vmatprep.mubr.f32.mxu0 0.0
      %677 = vmatmul.mubr.f32.gmra.mrb[0].mxu0 %v541
      %v678 = vpop.f32.mrb[0].mxu0
      %v679 = vadd.f32 0.0, %v678
      %v680 = vpop.f32.mrb[0].mxu0
      %681 = vmatprep.mubr.f32.mxu0 0.0
      %682 = vmatmul.mubr.f32.gmra.mrb[0].mxu0 %v544
      %v683 = vpop.f32.mrb[0].mxu0
      %v684 = vadd.f32 0.0, %v683
      %v685 = vpop.f32.mrb[0].mxu0
      %686 = vmatprep.mubr.f32.mxu0 0.0
      %687 = vmatmul.mubr.f32.gmra.mrb[0].mxu0 %v547
      %v688 = vpop.f32.mrb[0].mxu0
      %v689 = vadd.f32 0.0, %v688
      %v690 = vpop.f32.mrb[0].mxu0
      %691 = vmatprep.mubr.f32.mxu0 0.0
      %692 = vmatmul.mubr.f32.gmra.mrb[0].mxu0 %v550
      %v693 = vpop.f32.mrb[0].mxu0
      %v694 = vadd.f32 0.0, %v693
      %v695 = vpop.f32.mrb[0].mxu0
      %696 = vdwg.mxu0
      %697 = vrot.lane.b32.xlu0 %v399, 8
      %v698 = vpop.permute.xlu0 %697
      %699 = vrot.lane.b32.xlu0 %v404, 8
      %v700 = vpop.permute.xlu0 %699
      %701 = vrot.lane.b32.xlu0 %v409, 8
      %v702 = vpop.permute.xlu0 %701
      %703 = vrot.lane.b32.xlu0 %v414, 8
      %v704 = vpop.permute.xlu0 %703
      %705 = vrot.lane.b32.xlu0 %v419, 8
      %v706 = vpop.permute.xlu0 %705
      %707 = vrot.lane.b32.xlu0 %v424, 8
      %v708 = vpop.permute.xlu0 %707
      %709 = vrot.lane.b32.xlu0 %v429, 8
      %v710 = vpop.permute.xlu0 %709
      %711 = vrot.lane.b32.xlu0 %v434, 8
      %v712 = vpop.permute.xlu0 %711
      %v721 = vsel %vm484, %v349, %v698
      %v722 = vsel %vm484, %v352, %v700
      %v723 = vsel %vm484, %v355, %v702
      %v724 = vsel %vm484, %v358, %v704
      %v725 = vsel %vm484, %v361, %v706
      %v726 = vsel %vm484, %v364, %v708
      %v727 = vsel %vm484, %v367, %v710
      %v728 = vsel %vm484, %v370, %v712
      %s729 = scalar_lea.vmem %s1, 16
      %v730 = vld [vmem:[%s729] sm:$0xff]
      %v731 = vld [vmem:[%s729 + $0x8] sm:$0xff]
      %v740 = vrot.slane %v485, 1
      %v741 = vrot.slane %v486, 1
      %v742 = vsel %vm395, %v740, %v741
      %v743 = vrot.slane %v721, 1
      %v744 = vsel %vm395, %v741, %v743
      %v745 = vrot.slane %v487, 1
      %v746 = vrot.slane %v488, 1
      %v747 = vsel %vm395, %v745, %v746
      %v748 = vrot.slane %v722, 1
      %v749 = vsel %vm395, %v746, %v748
      %v750 = vrot.slane %v489, 1
      %v751 = vrot.slane %v490, 1
      %v752 = vsel %vm395, %v750, %v751
      %v753 = vrot.slane %v723, 1
      %v754 = vsel %vm395, %v751, %v753
      %v755 = vrot.slane %v491, 1
      %v756 = vrot.slane %v492, 1
      %v757 = vsel %vm395, %v755, %v756
      %v758 = vrot.slane %v724, 1
      %v759 = vsel %vm395, %v756, %v758
      %v760 = vrot.slane %v493, 1
      %v761 = vrot.slane %v494, 1
      %v762 = vsel %vm395, %v760, %v761
      %v763 = vrot.slane %v725, 1
      %v764 = vsel %vm395, %v761, %v763
      %v765 = vrot.slane %v495, 1
      %v766 = vrot.slane %v496, 1
      %v767 = vsel %vm395, %v765, %v766
      %v768 = vrot.slane %v726, 1
      %v769 = vsel %vm395, %v766, %v768
      %v770 = vrot.slane %v497, 1
      %v771 = vrot.slane %v498, 1
      %v772 = vsel %vm395, %v770, %v771
      %v773 = vrot.slane %v727, 1
      %v774 = vsel %vm395, %v771, %v773
      %v775 = vrot.slane %v499, 1
      %v776 = vrot.slane %v500, 1
      %v777 = vsel %vm395, %v775, %v776
      %v778 = vrot.slane %v728, 1
      %v779 = vsel %vm395, %v776, %v778
      %v780 = vsel %vm503, %v742, 0
      %v782 = vsel %vm503, %v744, 0
      %v784 = vsel %vm503, %v747, 0
      %v786 = vsel %vm503, %v749, 0
      %v788 = vsel %vm503, %v752, 0
      %v790 = vsel %vm503, %v754, 0
      %v792 = vsel %vm503, %v757, 0
      %v794 = vsel %vm503, %v759, 0
      %v796 = vsel %vm503, %v762, 0
      %v798 = vsel %vm503, %v764, 0
      %v800 = vsel %vm503, %v767, 0
      %v802 = vsel %vm503, %v769, 0
      %v804 = vsel %vm503, %v772, 0
      %v806 = vsel %vm503, %v774, 0
      %v808 = vsel %vm503, %v777, 0
      %v810 = vsel %vm503, %v779, 0
      %812 = vmatprep.subr.mxu0 0.0
      %813 = vmatpush1.msra.mxu0 %v730
      %814 = vmatprep.subr.mxu0 0.0
      %815 = vmatpush1.msra.mxu0 %v731
      %816 = vmatprep.subr.mxu0 0.0
      %817 = vmatpush1.msra.mxu0 0.0
      %818 = vmatprep.subr.mxu0 0.0
      %819 = vmatpush1.msra.mxu0 0.0
      %820 = vmatprep.subr.mxu0 0.0
      %821 = vmatpush1.msra.mxu0 0.0
      %822 = vmatprep.subr.mxu0 0.0
      %823 = vmatpush1.msra.mxu0 0.0
      %824 = vmatprep.subr.mxu0 0.0
      %825 = vmatpush1.msra.mxu0 0.0
      %826 = vmatprep.subr.mxu0 0.0
      %827 = vmatpush1.msra.mxu0 0.0
      %828 = vmatprep.subr.mxu0 0.0
      %829 = vmatpush1.msra.mxu0 0.0
      %830 = vmatprep.subr.mxu0 0.0
      %831 = vmatpush1.msra.mxu0 0.0
      %832 = vmatprep.subr.mxu0 0.0
      %833 = vmatpush1.msra.mxu0 0.0
      %834 = vmatprep.subr.mxu0 0.0
      %835 = vmatpush1.msra.mxu0 0.0
      %836 = vmatprep.subr.mxu0 0.0
      %837 = vmatpush1.msra.mxu0 0.0
      %838 = vmatprep.subr.mxu0 0.0
      %839 = vmatpush1.msra.mxu0 0.0
      %840 = vmatprep.subr.mxu0 0.0
      %841 = vmatpush1.msra.mxu0 0.0
      %842 = vmatprep.subr.mxu0 0.0
      %843 = vmatpush1.msra.mxu0 0.0
      %844 = vmatprep.subr.mxu0 0.0
      %845 = vmatpush1.msra.mxu0 0.0
      %846 = vmatprep.subr.mxu0 0.0
      %847 = vmatpush1.msra.mxu0 0.0
      %848 = vmatprep.subr.mxu0 0.0
      %849 = vmatpush1.msra.mxu0 0.0
      %850 = vmatprep.subr.mxu0 0.0
      %851 = vmatpush1.msra.mxu0 0.0
      %852 = vmatprep.subr.mxu0 0.0
      %853 = vmatpush1.msra.mxu0 0.0
      %854 = vmatprep.subr.mxu0 0.0
      %855 = vmatpush1.msra.mxu0 0.0
      %856 = vmatprep.subr.mxu0 0.0
      %857 = vmatpush1.msra.mxu0 0.0
      %858 = vmatprep.subr.mxu0 0.0
      %859 = vmatpush1.msra.mxu0 0.0
      %860 = vmatprep.subr.mxu0 0.0
      %861 = vmatpush1.msra.mxu0 0.0
      %862 = vmatprep.subr.mxu0 0.0
      %863 = vmatpush1.msra.mxu0 0.0
      %864 = vmatprep.subr.mxu0 0.0
      %865 = vmatpush1.msra.mxu0 0.0
      %866 = vmatprep.subr.mxu0 0.0
      %867 = vmatpush1.msra.mxu0 0.0
      %868 = vmatprep.subr.mxu0 0.0
      %869 = vmatpush1.msra.mxu0 0.0
      %870 = vmatprep.subr.mxu0 0.0
      %871 = vmatpush1.msra.mxu0 0.0
      %872 = vmatprep.subr.mxu0 0.0
      %873 = vmatpush1.msra.mxu0 0.0
      %874 = vmatprep.subr.mxu0 0.0
      %875 = vmatpush1.msra.mxu0 0.0
      %876 = vmatprep.mubr.f32.mxu0 0.0
      %877 = vmatmul.mubr.f32.gmra.mrb[0].mxu0 %v780
      %v878 = vpop.f32.mrb[0].mxu0
      %v879 = vadd.f32 0.0, %v878
      %v880 = vpop.f32.mrb[0].mxu0
      %881 = vmatprep.mubr.f32.mxu0 0.0
      %882 = vmatmul.mubr.f32.gmra.mrb[0].mxu0 %v782
      %v883 = vpop.f32.mrb[0].mxu0
      %v884 = vadd.f32 0.0, %v883
      %v885 = vpop.f32.mrb[0].mxu0
      %886 = vmatprep.mubr.f32.mxu0 0.0
      %887 = vmatmul.mubr.f32.gmra.mrb[0].mxu0 %v784
      %v888 = vpop.f32.mrb[0].mxu0
      %v889 = vadd.f32 0.0, %v888
      %v890 = vpop.f32.mrb[0].mxu0
      %891 = vmatprep.mubr.f32.mxu0 0.0
      %892 = vmatmul.mubr.f32.gmra.mrb[0].mxu0 %v786
      %v893 = vpop.f32.mrb[0].mxu0
      %v894 = vadd.f32 0.0, %v893
      %v895 = vpop.f32.mrb[0].mxu0
      %896 = vmatprep.mubr.f32.mxu0 0.0
      %897 = vmatmul.mubr.f32.gmra.mrb[0].mxu0 %v788
      %v898 = vpop.f32.mrb[0].mxu0
      %v899 = vadd.f32 0.0, %v898
      %v900 = vpop.f32.mrb[0].mxu0
      %901 = vmatprep.mubr.f32.mxu0 0.0
      %902 = vmatmul.mubr.f32.gmra.mrb[0].mxu0 %v790
      %v903 = vpop.f32.mrb[0].mxu0
      %v904 = vadd.f32 0.0, %v903
      %v905 = vpop.f32.mrb[0].mxu0
      %906 = vmatprep.mubr.f32.mxu0 0.0
      %907 = vmatmul.mubr.f32.gmra.mrb[0].mxu0 %v792
      %v908 = vpop.f32.mrb[0].mxu0
      %v909 = vadd.f32 0.0, %v908
      %v910 = vpop.f32.mrb[0].mxu0
      %911 = vmatprep.mubr.f32.mxu0 0.0
      %912 = vmatmul.mubr.f32.gmra.mrb[0].mxu0 %v794
      %v913 = vpop.f32.mrb[0].mxu0
      %v914 = vadd.f32 0.0, %v913
      %v915 = vpop.f32.mrb[0].mxu0
      %916 = vmatprep.mubr.f32.mxu0 0.0
      %917 = vmatmul.mubr.f32.gmra.mrb[0].mxu0 %v796
      %v918 = vpop.f32.mrb[0].mxu0
      %v919 = vadd.f32 0.0, %v918
      %v920 = vpop.f32.mrb[0].mxu0
      %921 = vmatprep.mubr.f32.mxu0 0.0
      %922 = vmatmul.mubr.f32.gmra.mrb[0].mxu0 %v798
      %v923 = vpop.f32.mrb[0].mxu0
      %v924 = vadd.f32 0.0, %v923
      %v925 = vpop.f32.mrb[0].mxu0
      %926 = vmatprep.mubr.f32.mxu0 0.0
      %927 = vmatmul.mubr.f32.gmra.mrb[0].mxu0 %v800
      %v928 = vpop.f32.mrb[0].mxu0
      %v929 = vadd.f32 0.0, %v928
      %v930 = vpop.f32.mrb[0].mxu0
      %931 = vmatprep.mubr.f32.mxu0 0.0
      %932 = vmatmul.mubr.f32.gmra.mrb[0].mxu0 %v802
      %v933 = vpop.f32.mrb[0].mxu0
      %v934 = vadd.f32 0.0, %v933
      %v935 = vpop.f32.mrb[0].mxu0
      %936 = vmatprep.mubr.f32.mxu0 0.0
      %937 = vmatmul.mubr.f32.gmra.mrb[0].mxu0 %v804
      %v938 = vpop.f32.mrb[0].mxu0
      %v939 = vadd.f32 0.0, %v938
      %v940 = vpop.f32.mrb[0].mxu0
      %941 = vmatprep.mubr.f32.mxu0 0.0
      %942 = vmatmul.mubr.f32.gmra.mrb[0].mxu0 %v806
      %v943 = vpop.f32.mrb[0].mxu0
      %v944 = vadd.f32 0.0, %v943
      %v945 = vpop.f32.mrb[0].mxu0
      %946 = vmatprep.mubr.f32.mxu0 0.0
      %947 = vmatmul.mubr.f32.gmra.mrb[0].mxu0 %v808
      %v948 = vpop.f32.mrb[0].mxu0
      %v949 = vadd.f32 0.0, %v948
      %v950 = vpop.f32.mrb[0].mxu0
      %951 = vmatprep.mubr.f32.mxu0 0.0
      %952 = vmatmul.mubr.f32.gmra.mrb[0].mxu0 %v810
      %v953 = vpop.f32.mrb[0].mxu0
      %v954 = vadd.f32 0.0, %v953
      %v955 = vpop.f32.mrb[0].mxu0
      %956 = vdwg.mxu0
      %973 = vrot.lane.b32.xlu0 %v879, 4
      %v974 = vpop.permute.xlu0 %973
      %975 = vrot.lane.b32.xlu0 %v884, 4
      %v976 = vpop.permute.xlu0 %975
      %977 = vrot.lane.b32.xlu0 %v889, 4
      %v978 = vpop.permute.xlu0 %977
      %979 = vrot.lane.b32.xlu0 %v894, 4
      %v980 = vpop.permute.xlu0 %979
      %981 = vrot.lane.b32.xlu0 %v899, 4
      %v982 = vpop.permute.xlu0 %981
      %983 = vrot.lane.b32.xlu0 %v904, 4
      %v984 = vpop.permute.xlu0 %983
      %985 = vrot.lane.b32.xlu0 %v909, 4
      %v986 = vpop.permute.xlu0 %985
      %987 = vrot.lane.b32.xlu0 %v914, 4
      %v988 = vpop.permute.xlu0 %987
      %989 = vrot.lane.b32.xlu0 %v919, 4
      %v990 = vpop.permute.xlu0 %989
      %991 = vrot.lane.b32.xlu0 %v924, 4
      %v992 = vpop.permute.xlu0 %991
      %993 = vrot.lane.b32.xlu0 %v929, 4
      %v994 = vpop.permute.xlu0 %993
      %995 = vrot.lane.b32.xlu0 %v934, 4
      %v996 = vpop.permute.xlu0 %995
      %997 = vrot.lane.b32.xlu0 %v939, 4
      %v998 = vpop.permute.xlu0 %997
      %999 = vrot.lane.b32.xlu0 %v944, 4
      %v1000 = vpop.permute.xlu0 %999
      %1001 = vrot.lane.b32.xlu0 %v949, 4
      %v1002 = vpop.permute.xlu0 %1001
      %1003 = vrot.lane.b32.xlu0 %v954, 4
      %v1004 = vpop.permute.xlu0 %1003
      %v1021 = vsel %vm346, %v619, %v974
      %v1022 = vsel %vm346, %v624, %v976
      %v1023 = vsel %vm346, %v629, %v978
      %v1024 = vsel %vm346, %v634, %v980
      %v1025 = vsel %vm346, %v639, %v982
      %v1026 = vsel %vm346, %v644, %v984
      %v1027 = vsel %vm346, %v649, %v986
      %v1028 = vsel %vm346, %v654, %v988
      %v1029 = vsel %vm346, %v659, %v990
      %v1030 = vsel %vm346, %v664, %v992
      %v1031 = vsel %vm346, %v669, %v994
      %v1032 = vsel %vm346, %v674, %v996
      %v1033 = vsel %vm346, %v679, %v998
      %v1034 = vsel %vm346, %v684, %v1000
      %v1035 = vsel %vm346, %v689, %v1002
      %v1036 = vsel %vm346, %v694, %v1004
      %v1037 = vld [vmem:[%s2] sm:$0x1]
      %v1039 = vlaneseq
      %v1040 = vshrl.u32 %v1039, 7
      %v1041 = vsub.s32 0, %v1040
      %v1042 = vrot.slane %v1037, %v1041
      %v1044 = vadd.f32 %v1021, %v1042
      %v1045 = vadd.f32 %v1022, %v1042
      %v1046 = vadd.f32 %v1023, %v1042
      %v1047 = vadd.f32 %v1024, %v1042
      %v1048 = vadd.f32 %v1025, %v1042
      %v1049 = vadd.f32 %v1026, %v1042
      %v1050 = vadd.f32 %v1027, %v1042
      %v1051 = vadd.f32 %v1028, %v1042
      %v1052 = vadd.f32 %v1029, %v1042
      %v1053 = vadd.f32 %v1030, %v1042
      %v1054 = vadd.f32 %v1031, %v1042
      %v1055 = vadd.f32 %v1032, %v1042
      %v1056 = vadd.f32 %v1033, %v1042
      %v1057 = vadd.f32 %v1034, %v1042
      %v1058 = vadd.f32 %v1035, %v1042
      %v1059 = vadd.f32 %v1036, %v1042
      %1060 = vst.msk [vmem:[%s194] sm:$0xff] %vm484, %v1044
      %1061 = vst.msk [vmem:[%s194 + $0x8] sm:$0xff] %vm484, %v1045
      %1062 = vst.msk [vmem:[%s194 + $0x20] sm:$0xff] %vm484, %v1046
      %1063 = vst.msk [vmem:[%s194 + $0x28] sm:$0xff] %vm484, %v1047
      %1064 = vst.msk [vmem:[%s194 + $0x40] sm:$0xff] %vm484, %v1048
      %1065 = vst.msk [vmem:[%s194 + $0x48] sm:$0xff] %vm484, %v1049
      %1066 = vst.msk [vmem:[%s194 + $0x60] sm:$0xff] %vm484, %v1050
      %1067 = vst.msk [vmem:[%s194 + $0x68] sm:$0xff] %vm484, %v1051
      %1068 = vst.msk [vmem:[%s194 + $0x80] sm:$0xff] %vm484, %v1052
      %1069 = vst.msk [vmem:[%s194 + $0x88] sm:$0xff] %vm484, %v1053
      %1070 = vst.msk [vmem:[%s194 + $0xa0] sm:$0xff] %vm484, %v1054
      %1071 = vst.msk [vmem:[%s194 + $0xa8] sm:$0xff] %vm484, %v1055
      %1072 = vst.msk [vmem:[%s194 + $0xc0] sm:$0xff] %vm484, %v1056
      %1073 = vst.msk [vmem:[%s194 + $0xc8] sm:$0xff] %vm484, %v1057
      %1074 = vst.msk [vmem:[%s194 + $0xe0] sm:$0xff] %vm484, %v1058
      %1075 = vst.msk [vmem:[%s194 + $0xe8] sm:$0xff] %vm484, %v1059
      %v1076 = vld [vmem:[%s225] sm:$0xff]
      %v1077 = vld [vmem:[%s225 + $0x8] sm:$0xff]
      %v1078 = vld [vmem:[%s225 + $0x10] sm:$0x3]
      %v1079 = vld [vmem:[%s225 + $0x18] sm:$0xff]
      %v1080 = vld [vmem:[%s225 + $0x20] sm:$0xff]
      %v1081 = vld [vmem:[%s225 + $0x28] sm:$0x3]
      %v1082 = vld [vmem:[%s225 + $0x30] sm:$0xff]
      %v1083 = vld [vmem:[%s225 + $0x38] sm:$0xff]
      %v1084 = vld [vmem:[%s225 + $0x40] sm:$0x3]
      %v1085 = vld [vmem:[%s225 + $0x48] sm:$0xff]
      %v1086 = vld [vmem:[%s225 + $0x50] sm:$0xff]
      %v1087 = vld [vmem:[%s225 + $0x58] sm:$0x3]
      %v1088 = vld [vmem:[%s225 + $0x60] sm:$0xff]
      %v1089 = vld [vmem:[%s225 + $0x68] sm:$0xff]
      %v1090 = vld [vmem:[%s225 + $0x70] sm:$0x3]
      %v1091 = vld [vmem:[%s225 + $0x78] sm:$0xff]
      %v1092 = vld [vmem:[%s225 + $0x80] sm:$0xff]
      %v1093 = vld [vmem:[%s225 + $0x88] sm:$0x3]
      %v1094 = vld [vmem:[%s225 + $0x90] sm:$0xff]
      %v1095 = vld [vmem:[%s225 + $0x98] sm:$0xff]
      %v1096 = vld [vmem:[%s225 + $0xa0] sm:$0x3]
      %v1097 = vld [vmem:[%s225 + $0xa8] sm:$0xff]
      %v1098 = vld [vmem:[%s225 + $0xb0] sm:$0xff]
      %v1099 = vld [vmem:[%s225 + $0xb8] sm:$0x3]
      %s1100 = sadd.s32 %s196, 2
      %s1101 = smul.u32 %s1100, 24
      %s1102 = scalar_lea.vmem %s184, %s1101
      %v1103 = vld [vmem:[%s1102] sm:$0xff]
      %v1104 = vld [vmem:[%s1102 + $0x8] sm:$0xff]
      %v1105 = vld [vmem:[%s1102 + $0x10] sm:$0x3]
      %v1106 = vld [vmem:[%s1102 + $0x18] sm:$0xff]
      %v1107 = vld [vmem:[%s1102 + $0x20] sm:$0xff]
      %v1108 = vld [vmem:[%s1102 + $0x28] sm:$0x3]
      %v1109 = vld [vmem:[%s1102 + $0x30] sm:$0xff]
      %v1110 = vld [vmem:[%s1102 + $0x38] sm:$0xff]
      %v1111 = vld [vmem:[%s1102 + $0x40] sm:$0x3]
      %v1112 = vld [vmem:[%s1102 + $0x48] sm:$0xff]
      %v1113 = vld [vmem:[%s1102 + $0x50] sm:$0xff]
      %v1114 = vld [vmem:[%s1102 + $0x58] sm:$0x3]
      %v1115 = vld [vmem:[%s1102 + $0x60] sm:$0xff]
      %v1116 = vld [vmem:[%s1102 + $0x68] sm:$0xff]
      %v1117 = vld [vmem:[%s1102 + $0x70] sm:$0x3]
      %v1118 = vld [vmem:[%s1102 + $0x78] sm:$0xff]
      %v1119 = vld [vmem:[%s1102 + $0x80] sm:$0xff]
      %v1120 = vld [vmem:[%s1102 + $0x88] sm:$0x3]
      %v1121 = vld [vmem:[%s1102 + $0x90] sm:$0xff]
      %v1122 = vld [vmem:[%s1102 + $0x98] sm:$0xff]
      %v1123 = vld [vmem:[%s1102 + $0xa0] sm:$0x3]
      %v1124 = vld [vmem:[%s1102 + $0xa8] sm:$0xff]
      %v1125 = vld [vmem:[%s1102 + $0xb0] sm:$0xff]
      %v1126 = vld [vmem:[%s1102 + $0xb8] sm:$0x3]
      %1151 = vrot.lane.b32.xlu0 %v1103, 4
      %v1152 = vpop.permute.xlu0 %1151
      %1153 = vrot.lane.b32.xlu0 %v1104, 4
      %v1154 = vpop.permute.xlu0 %1153
      %1155 = vrot.lane.b32.xlu0 %v1105, 4
      %v1156 = vpop.permute.xlu0 %1155
      %1157 = vrot.lane.b32.xlu0 %v1106, 4
      %v1158 = vpop.permute.xlu0 %1157
      %1159 = vrot.lane.b32.xlu0 %v1107, 4
      %v1160 = vpop.permute.xlu0 %1159
      %1161 = vrot.lane.b32.xlu0 %v1108, 4
      %v1162 = vpop.permute.xlu0 %1161
      %1163 = vrot.lane.b32.xlu0 %v1109, 4
      %v1164 = vpop.permute.xlu0 %1163
      %1165 = vrot.lane.b32.xlu0 %v1110, 4
      %v1166 = vpop.permute.xlu0 %1165
      %1167 = vrot.lane.b32.xlu0 %v1111, 4
      %v1168 = vpop.permute.xlu0 %1167
      %1169 = vrot.lane.b32.xlu0 %v1112, 4
      %v1170 = vpop.permute.xlu0 %1169
      %1171 = vrot.lane.b32.xlu0 %v1113, 4
      %v1172 = vpop.permute.xlu0 %1171
      %1173 = vrot.lane.b32.xlu0 %v1114, 4
      %v1174 = vpop.permute.xlu0 %1173
      %1175 = vrot.lane.b32.xlu0 %v1115, 4
      %v1176 = vpop.permute.xlu0 %1175
      %1177 = vrot.lane.b32.xlu0 %v1116, 4
      %v1178 = vpop.permute.xlu0 %1177
      %1179 = vrot.lane.b32.xlu0 %v1117, 4
      %v1180 = vpop.permute.xlu0 %1179
      %1181 = vrot.lane.b32.xlu0 %v1118, 4
      %v1182 = vpop.permute.xlu0 %1181
      %1183 = vrot.lane.b32.xlu0 %v1119, 4
      %v1184 = vpop.permute.xlu0 %1183
      %1185 = vrot.lane.b32.xlu0 %v1120, 4
      %v1186 = vpop.permute.xlu0 %1185
      %1187 = vrot.lane.b32.xlu0 %v1121, 4
      %v1188 = vpop.permute.xlu0 %1187
      %1189 = vrot.lane.b32.xlu0 %v1122, 4
      %v1190 = vpop.permute.xlu0 %1189
      %1191 = vrot.lane.b32.xlu0 %v1123, 4
      %v1192 = vpop.permute.xlu0 %1191
      %1193 = vrot.lane.b32.xlu0 %v1124, 4
      %v1194 = vpop.permute.xlu0 %1193
      %1195 = vrot.lane.b32.xlu0 %v1125, 4
      %v1196 = vpop.permute.xlu0 %1195
      %1197 = vrot.lane.b32.xlu0 %v1126, 4
      %v1198 = vpop.permute.xlu0 %1197
      %v1223 = vsel %vm346, %v1076, %v1152
      %v1224 = vsel %vm346, %v1077, %v1154
      %v1225 = vsel %vm346, %v1078, %v1156
      %v1226 = vsel %vm346, %v1079, %v1158
      %v1227 = vsel %vm346, %v1080, %v1160
      %v1228 = vsel %vm346, %v1081, %v1162
      %v1229 = vsel %vm346, %v1082, %v1164
      %v1230 = vsel %vm346, %v1083, %v1166
      %v1231 = vsel %vm346, %v1084, %v1168
      %v1232 = vsel %vm346, %v1085, %v1170
      %v1233 = vsel %vm346, %v1086, %v1172
      %v1234 = vsel %vm346, %v1087, %v1174
      %v1235 = vsel %vm346, %v1088, %v1176
      %v1236 = vsel %vm346, %v1089, %v1178
      %v1237 = vsel %vm346, %v1090, %v1180
      %v1238 = vsel %vm346, %v1091, %v1182
      %v1239 = vsel %vm346, %v1092, %v1184
      %v1240 = vsel %vm346, %v1093, %v1186
      %v1241 = vsel %vm346, %v1094, %v1188
      %v1242 = vsel %vm346, %v1095, %v1190
      %v1243 = vsel %vm346, %v1096, %v1192
      %v1244 = vsel %vm346, %v1097, %v1194
      %v1245 = vsel %vm346, %v1098, %v1196
      %v1246 = vsel %vm346, %v1099, %v1198
      %v1271 = vrot.slane %v1223, 1
      %v1272 = vrot.slane %v1224, 1
      %v1273 = vsel %vm395, %v1271, %v1272
      %v1274 = vrot.slane %v1225, 1
      %v1275 = vsel %vm395, %v1272, %v1274
      %v1276 = vrot.slane %v1226, 1
      %v1277 = vrot.slane %v1227, 1
      %v1278 = vsel %vm395, %v1276, %v1277
      %v1279 = vrot.slane %v1228, 1
      %v1280 = vsel %vm395, %v1277, %v1279
      %v1281 = vrot.slane %v1229, 1
      %v1282 = vrot.slane %v1230, 1
      %v1283 = vsel %vm395, %v1281, %v1282
      %v1284 = vrot.slane %v1231, 1
      %v1285 = vsel %vm395, %v1282, %v1284
      %v1286 = vrot.slane %v1232, 1
      %v1287 = vrot.slane %v1233, 1
      %v1288 = vsel %vm395, %v1286, %v1287
      %v1289 = vrot.slane %v1234, 1
      %v1290 = vsel %vm395, %v1287, %v1289
      %v1291 = vrot.slane %v1235, 1
      %v1292 = vrot.slane %v1236, 1
      %v1293 = vsel %vm395, %v1291, %v1292
      %v1294 = vrot.slane %v1237, 1
      %v1295 = vsel %vm395, %v1292, %v1294
      %v1296 = vrot.slane %v1238, 1
      %v1297 = vrot.slane %v1239, 1
      %v1298 = vsel %vm395, %v1296, %v1297
      %v1299 = vrot.slane %v1240, 1
      %v1300 = vsel %vm395, %v1297, %v1299
      %v1301 = vrot.slane %v1241, 1
      %v1302 = vrot.slane %v1242, 1
      %v1303 = vsel %vm395, %v1301, %v1302
      %v1304 = vrot.slane %v1243, 1
      %v1305 = vsel %vm395, %v1302, %v1304
      %v1306 = vrot.slane %v1244, 1
      %v1307 = vrot.slane %v1245, 1
      %v1308 = vsel %vm395, %v1306, %v1307
      %v1309 = vrot.slane %v1246, 1
      %v1310 = vsel %vm395, %v1307, %v1309
      %1311 = vrot.lane.b32.xlu0 %v1273, 8
      %v1312 = vpop.permute.xlu0 %1311
      %1313 = vrot.lane.b32.xlu0 %v1275, 8
      %v1314 = vpop.permute.xlu0 %1313
      %1315 = vrot.lane.b32.xlu0 %v1278, 8
      %v1316 = vpop.permute.xlu0 %1315
      %1317 = vrot.lane.b32.xlu0 %v1280, 8
      %v1318 = vpop.permute.xlu0 %1317
      %1319 = vrot.lane.b32.xlu0 %v1283, 8
      %v1320 = vpop.permute.xlu0 %1319
      %1321 = vrot.lane.b32.xlu0 %v1285, 8
      %v1322 = vpop.permute.xlu0 %1321
      %1323 = vrot.lane.b32.xlu0 %v1288, 8
      %v1324 = vpop.permute.xlu0 %1323
      %1325 = vrot.lane.b32.xlu0 %v1290, 8
      %v1326 = vpop.permute.xlu0 %1325
      %1327 = vrot.lane.b32.xlu0 %v1293, 8
      %v1328 = vpop.permute.xlu0 %1327
      %1329 = vrot.lane.b32.xlu0 %v1295, 8
      %v1330 = vpop.permute.xlu0 %1329
      %1331 = vrot.lane.b32.xlu0 %v1298, 8
      %v1332 = vpop.permute.xlu0 %1331
      %1333 = vrot.lane.b32.xlu0 %v1300, 8
      %v1334 = vpop.permute.xlu0 %1333
      %1335 = vrot.lane.b32.xlu0 %v1303, 8
      %v1336 = vpop.permute.xlu0 %1335
      %1337 = vrot.lane.b32.xlu0 %v1305, 8
      %v1338 = vpop.permute.xlu0 %1337
      %1339 = vrot.lane.b32.xlu0 %v1308, 8
      %v1340 = vpop.permute.xlu0 %1339
      %1341 = vrot.lane.b32.xlu0 %v1310, 8
      %v1342 = vpop.permute.xlu0 %1341
      %v1359 = vsel %vm484, %v1223, %v1312
      %v1360 = vsel %vm484, %v1224, %v1314
      %v1361 = vsel %vm484, %v1226, %v1316
      %v1362 = vsel %vm484, %v1227, %v1318
      %v1363 = vsel %vm484, %v1229, %v1320
      %v1364 = vsel %vm484, %v1230, %v1322
      %v1365 = vsel %vm484, %v1232, %v1324
      %v1366 = vsel %vm484, %v1233, %v1326
      %v1367 = vsel %vm484, %v1235, %v1328
      %v1368 = vsel %vm484, %v1236, %v1330
      %v1369 = vsel %vm484, %v1238, %v1332
      %v1370 = vsel %vm484, %v1239, %v1334
      %v1371 = vsel %vm484, %v1241, %v1336
      %v1372 = vsel %vm484, %v1242, %v1338
      %v1373 = vsel %vm484, %v1244, %v1340
      %v1374 = vsel %vm484, %v1245, %v1342
      %s1375 = scalar_lea.vmem %s1, 32
      %v1376 = vld [vmem:[%s1375] sm:$0xff]
      %v1377 = vld [vmem:[%s1375 + $0x8] sm:$0xff]
      %v1379 = vsel %vm503, %v1359, 0
      %v1382 = vsel %vm503, %v1360, 0
      %v1385 = vsel %vm503, %v1361, 0
      %v1388 = vsel %vm503, %v1362, 0
      %v1391 = vsel %vm503, %v1363, 0
      %v1394 = vsel %vm503, %v1364, 0
      %v1397 = vsel %vm503, %v1365, 0
      %v1400 = vsel %vm503, %v1366, 0
      %v1403 = vsel %vm503, %v1367, 0
      %v1406 = vsel %vm503, %v1368, 0
      %v1409 = vsel %vm503, %v1369, 0
      %v1412 = vsel %vm503, %v1370, 0
      %v1415 = vsel %vm503, %v1371, 0
      %v1418 = vsel %vm503, %v1372, 0
      %v1421 = vsel %vm503, %v1373, 0
      %v1424 = vsel %vm503, %v1374, 0
      %1426 = vmatprep.subr.mxu0 0.0
      %1427 = vmatpush1.msra.mxu0 %v1376
      %1428 = vmatprep.subr.mxu0 0.0
      %1429 = vmatpush1.msra.mxu0 %v1377
      %1430 = vmatprep.subr.mxu0 0.0
      %1431 = vmatpush1.msra.mxu0 0.0
      %1432 = vmatprep.subr.mxu0 0.0
      %1433 = vmatpush1.msra.mxu0 0.0
      %1434 = vmatprep.subr.mxu0 0.0
      %1435 = vmatpush1.msra.mxu0 0.0
      %1436 = vmatprep.subr.mxu0 0.0
      %1437 = vmatpush1.msra.mxu0 0.0
      %1438 = vmatprep.subr.mxu0 0.0
      %1439 = vmatpush1.msra.mxu0 0.0
      %1440 = vmatprep.subr.mxu0 0.0
      %1441 = vmatpush1.msra.mxu0 0.0
      %1442 = vmatprep.subr.mxu0 0.0
      %1443 = vmatpush1.msra.mxu0 0.0
      %1444 = vmatprep.subr.mxu0 0.0
      %1445 = vmatpush1.msra.mxu0 0.0
      %1446 = vmatprep.subr.mxu0 0.0
      %1447 = vmatpush1.msra.mxu0 0.0
      %1448 = vmatprep.subr.mxu0 0.0
      %1449 = vmatpush1.msra.mxu0 0.0
      %1450 = vmatprep.subr.mxu0 0.0
      %1451 = vmatpush1.msra.mxu0 0.0
      %1452 = vmatprep.subr.mxu0 0.0
      %1453 = vmatpush1.msra.mxu0 0.0
      %1454 = vmatprep.subr.mxu0 0.0
      %1455 = vmatpush1.msra.mxu0 0.0
      %1456 = vmatprep.subr.mxu0 0.0
      %1457 = vmatpush1.msra.mxu0 0.0
      %1458 = vmatprep.subr.mxu0 0.0
      %1459 = vmatpush1.msra.mxu0 0.0
      %1460 = vmatprep.subr.mxu0 0.0
      %1461 = vmatpush1.msra.mxu0 0.0
      %1462 = vmatprep.subr.mxu0 0.0
      %1463 = vmatpush1.msra.mxu0 0.0
      %1464 = vmatprep.subr.mxu0 0.0
      %1465 = vmatpush1.msra.mxu0 0.0
      %1466 = vmatprep.subr.mxu0 0.0
      %1467 = vmatpush1.msra.mxu0 0.0
      %1468 = vmatprep.subr.mxu0 0.0
      %1469 = vmatpush1.msra.mxu0 0.0
      %1470 = vmatprep.subr.mxu0 0.0
      %1471 = vmatpush1.msra.mxu0 0.0
      %1472 = vmatprep.subr.mxu0 0.0
      %1473 = vmatpush1.msra.mxu0 0.0
      %1474 = vmatprep.subr.mxu0 0.0
      %1475 = vmatpush1.msra.mxu0 0.0
      %1476 = vmatprep.subr.mxu0 0.0
      %1477 = vmatpush1.msra.mxu0 0.0
      %1478 = vmatprep.subr.mxu0 0.0
      %1479 = vmatpush1.msra.mxu0 0.0
      %1480 = vmatprep.subr.mxu0 0.0
      %1481 = vmatpush1.msra.mxu0 0.0
      %1482 = vmatprep.subr.mxu0 0.0
      %1483 = vmatpush1.msra.mxu0 0.0
      %1484 = vmatprep.subr.mxu0 0.0
      %1485 = vmatpush1.msra.mxu0 0.0
      %1486 = vmatprep.subr.mxu0 0.0
      %1487 = vmatpush1.msra.mxu0 0.0
      %1488 = vmatprep.subr.mxu0 0.0
      %1489 = vmatpush1.msra.mxu0 0.0
      %1490 = vmatprep.mubr.f32.mxu0 0.0
      %1491 = vmatmul.mubr.f32.gmra.mrb[0].mxu0 %v1379
      %v1492 = vpop.f32.mrb[0].mxu0
      %v1493 = vadd.f32 0.0, %v1492
      %v1494 = vpop.f32.mrb[0].mxu0
      %1495 = vmatprep.mubr.f32.mxu0 0.0
      %1496 = vmatmul.mubr.f32.gmra.mrb[0].mxu0 %v1382
      %v1497 = vpop.f32.mrb[0].mxu0
      %v1498 = vadd.f32 0.0, %v1497
      %v1499 = vpop.f32.mrb[0].mxu0
      %1500 = vmatprep.mubr.f32.mxu0 0.0
      %1501 = vmatmul.mubr.f32.gmra.mrb[0].mxu0 %v1385
      %v1502 = vpop.f32.mrb[0].mxu0
      %v1503 = vadd.f32 0.0, %v1502
      %v1504 = vpop.f32.mrb[0].mxu0
      %1505 = vmatprep.mubr.f32.mxu0 0.0
      %1506 = vmatmul.mubr.f32.gmra.mrb[0].mxu0 %v1388
      %v1507 = vpop.f32.mrb[0].mxu0
      %v1508 = vadd.f32 0.0, %v1507
      %v1509 = vpop.f32.mrb[0].mxu0
      %1510 = vmatprep.mubr.f32.mxu0 0.0
      %1511 = vmatmul.mubr.f32.gmra.mrb[0].mxu0 %v1391
      %v1512 = vpop.f32.mrb[0].mxu0
      %v1513 = vadd.f32 0.0, %v1512
      %v1514 = vpop.f32.mrb[0].mxu0
      %1515 = vmatprep.mubr.f32.mxu0 0.0
      %1516 = vmatmul.mubr.f32.gmra.mrb[0].mxu0 %v1394
      %v1517 = vpop.f32.mrb[0].mxu0
      %v1518 = vadd.f32 0.0, %v1517
      %v1519 = vpop.f32.mrb[0].mxu0
      %1520 = vmatprep.mubr.f32.mxu0 0.0
      %1521 = vmatmul.mubr.f32.gmra.mrb[0].mxu0 %v1397
      %v1522 = vpop.f32.mrb[0].mxu0
      %v1523 = vadd.f32 0.0, %v1522
      %v1524 = vpop.f32.mrb[0].mxu0
      %1525 = vmatprep.mubr.f32.mxu0 0.0
      %1526 = vmatmul.mubr.f32.gmra.mrb[0].mxu0 %v1400
      %v1527 = vpop.f32.mrb[0].mxu0
      %v1528 = vadd.f32 0.0, %v1527
      %v1529 = vpop.f32.mrb[0].mxu0
      %1530 = vmatprep.mubr.f32.mxu0 0.0
      %1531 = vmatmul.mubr.f32.gmra.mrb[0].mxu0 %v1403
      %v1532 = vpop.f32.mrb[0].mxu0
      %v1533 = vadd.f32 0.0, %v1532
      %v1534 = vpop.f32.mrb[0].mxu0
      %1535 = vmatprep.mubr.f32.mxu0 0.0
      %1536 = vmatmul.mubr.f32.gmra.mrb[0].mxu0 %v1406
      %v1537 = vpop.f32.mrb[0].mxu0
      %v1538 = vadd.f32 0.0, %v1537
      %v1539 = vpop.f32.mrb[0].mxu0
      %1540 = vmatprep.mubr.f32.mxu0 0.0
      %1541 = vmatmul.mubr.f32.gmra.mrb[0].mxu0 %v1409
      %v1542 = vpop.f32.mrb[0].mxu0
      %v1543 = vadd.f32 0.0, %v1542
      %v1544 = vpop.f32.mrb[0].mxu0
      %1545 = vmatprep.mubr.f32.mxu0 0.0
      %1546 = vmatmul.mubr.f32.gmra.mrb[0].mxu0 %v1412
      %v1547 = vpop.f32.mrb[0].mxu0
      %v1548 = vadd.f32 0.0, %v1547
      %v1549 = vpop.f32.mrb[0].mxu0
      %1550 = vmatprep.mubr.f32.mxu0 0.0
      %1551 = vmatmul.mubr.f32.gmra.mrb[0].mxu0 %v1415
      %v1552 = vpop.f32.mrb[0].mxu0
      %v1553 = vadd.f32 0.0, %v1552
      %v1554 = vpop.f32.mrb[0].mxu0
      %1555 = vmatprep.mubr.f32.mxu0 0.0
      %1556 = vmatmul.mubr.f32.gmra.mrb[0].mxu0 %v1418
      %v1557 = vpop.f32.mrb[0].mxu0
      %v1558 = vadd.f32 0.0, %v1557
      %v1559 = vpop.f32.mrb[0].mxu0
      %1560 = vmatprep.mubr.f32.mxu0 0.0
      %1561 = vmatmul.mubr.f32.gmra.mrb[0].mxu0 %v1421
      %v1562 = vpop.f32.mrb[0].mxu0
      %v1563 = vadd.f32 0.0, %v1562
      %v1564 = vpop.f32.mrb[0].mxu0
      %1565 = vmatprep.mubr.f32.mxu0 0.0
      %1566 = vmatmul.mubr.f32.gmra.mrb[0].mxu0 %v1424
      %v1567 = vpop.f32.mrb[0].mxu0
      %v1568 = vadd.f32 0.0, %v1567
      %v1569 = vpop.f32.mrb[0].mxu0
      %1570 = vdwg.mxu0
      %1571 = vrot.lane.b32.xlu0 %v1274, 8
      %v1572 = vpop.permute.xlu0 %1571
      %1573 = vrot.lane.b32.xlu0 %v1279, 8
      %v1574 = vpop.permute.xlu0 %1573
      %1575 = vrot.lane.b32.xlu0 %v1284, 8
      %v1576 = vpop.permute.xlu0 %1575
      %1577 = vrot.lane.b32.xlu0 %v1289, 8
      %v1578 = vpop.permute.xlu0 %1577
      %1579 = vrot.lane.b32.xlu0 %v1294, 8
      %v1580 = vpop.permute.xlu0 %1579
      %1581 = vrot.lane.b32.xlu0 %v1299, 8
      %v1582 = vpop.permute.xlu0 %1581
      %1583 = vrot.lane.b32.xlu0 %v1304, 8
      %v1584 = vpop.permute.xlu0 %1583
      %1585 = vrot.lane.b32.xlu0 %v1309, 8
      %v1586 = vpop.permute.xlu0 %1585
      %v1595 = vsel %vm484, %v1225, %v1572
      %v1596 = vsel %vm484, %v1228, %v1574
      %v1597 = vsel %vm484, %v1231, %v1576
      %v1598 = vsel %vm484, %v1234, %v1578
      %v1599 = vsel %vm484, %v1237, %v1580
      %v1600 = vsel %vm484, %v1240, %v1582
      %v1601 = vsel %vm484, %v1243, %v1584
      %v1602 = vsel %vm484, %v1246, %v1586
      %s1603 = scalar_lea.vmem %s1, 48
      %v1604 = vld [vmem:[%s1603] sm:$0xff]
      %v1605 = vld [vmem:[%s1603 + $0x8] sm:$0xff]
      %v1614 = vrot.slane %v1359, 1
      %v1615 = vrot.slane %v1360, 1
      %v1616 = vsel %vm395, %v1614, %v1615
      %v1617 = vrot.slane %v1595, 1
      %v1618 = vsel %vm395, %v1615, %v1617
      %v1619 = vrot.slane %v1361, 1
      %v1620 = vrot.slane %v1362, 1
      %v1621 = vsel %vm395, %v1619, %v1620
      %v1622 = vrot.slane %v1596, 1
      %v1623 = vsel %vm395, %v1620, %v1622
      %v1624 = vrot.slane %v1363, 1
      %v1625 = vrot.slane %v1364, 1
      %v1626 = vsel %vm395, %v1624, %v1625
      %v1627 = vrot.slane %v1597, 1
      %v1628 = vsel %vm395, %v1625, %v1627
      %v1629 = vrot.slane %v1365, 1
      %v1630 = vrot.slane %v1366, 1
      %v1631 = vsel %vm395, %v1629, %v1630
      %v1632 = vrot.slane %v1598, 1
      %v1633 = vsel %vm395, %v1630, %v1632
      %v1634 = vrot.slane %v1367, 1
      %v1635 = vrot.slane %v1368, 1
      %v1636 = vsel %vm395, %v1634, %v1635
      %v1637 = vrot.slane %v1599, 1
      %v1638 = vsel %vm395, %v1635, %v1637
      %v1639 = vrot.slane %v1369, 1
      %v1640 = vrot.slane %v1370, 1
      %v1641 = vsel %vm395, %v1639, %v1640
      %v1642 = vrot.slane %v1600, 1
      %v1643 = vsel %vm395, %v1640, %v1642
      %v1644 = vrot.slane %v1371, 1
      %v1645 = vrot.slane %v1372, 1
      %v1646 = vsel %vm395, %v1644, %v1645
      %v1647 = vrot.slane %v1601, 1
      %v1648 = vsel %vm395, %v1645, %v1647
      %v1649 = vrot.slane %v1373, 1
      %v1650 = vrot.slane %v1374, 1
      %v1651 = vsel %vm395, %v1649, %v1650
      %v1652 = vrot.slane %v1602, 1
      %v1653 = vsel %vm395, %v1650, %v1652
      %v1654 = vsel %vm503, %v1616, 0
      %v1656 = vsel %vm503, %v1618, 0
      %v1658 = vsel %vm503, %v1621, 0
      %v1660 = vsel %vm503, %v1623, 0
      %v1662 = vsel %vm503, %v1626, 0
      %v1664 = vsel %vm503, %v1628, 0
      %v1666 = vsel %vm503, %v1631, 0
      %v1668 = vsel %vm503, %v1633, 0
      %v1670 = vsel %vm503, %v1636, 0
      %v1672 = vsel %vm503, %v1638, 0
      %v1674 = vsel %vm503, %v1641, 0
      %v1676 = vsel %vm503, %v1643, 0
      %v1678 = vsel %vm503, %v1646, 0
      %v1680 = vsel %vm503, %v1648, 0
      %v1682 = vsel %vm503, %v1651, 0
      %v1684 = vsel %vm503, %v1653, 0
      %1686 = vmatprep.subr.mxu0 0.0
      %1687 = vmatpush1.msra.mxu0 %v1604
      %1688 = vmatprep.subr.mxu0 0.0
      %1689 = vmatpush1.msra.mxu0 %v1605
      %1690 = vmatprep.subr.mxu0 0.0
      %1691 = vmatpush1.msra.mxu0 0.0
      %1692 = vmatprep.subr.mxu0 0.0
      %1693 = vmatpush1.msra.mxu0 0.0
      %1694 = vmatprep.subr.mxu0 0.0
      %1695 = vmatpush1.msra.mxu0 0.0
      %1696 = vmatprep.subr.mxu0 0.0
      %1697 = vmatpush1.msra.mxu0 0.0
      %1698 = vmatprep.subr.mxu0 0.0
      %1699 = vmatpush1.msra.mxu0 0.0
      %1700 = vmatprep.subr.mxu0 0.0
      %1701 = vmatpush1.msra.mxu0 0.0
      %1702 = vmatprep.subr.mxu0 0.0
      %1703 = vmatpush1.msra.mxu0 0.0
      %1704 = vmatprep.subr.mxu0 0.0
      %1705 = vmatpush1.msra.mxu0 0.0
      %1706 = vmatprep.subr.mxu0 0.0
      %1707 = vmatpush1.msra.mxu0 0.0
      %1708 = vmatprep.subr.mxu0 0.0
      %1709 = vmatpush1.msra.mxu0 0.0
      %1710 = vmatprep.subr.mxu0 0.0
      %1711 = vmatpush1.msra.mxu0 0.0
      %1712 = vmatprep.subr.mxu0 0.0
      %1713 = vmatpush1.msra.mxu0 0.0
      %1714 = vmatprep.subr.mxu0 0.0
      %1715 = vmatpush1.msra.mxu0 0.0
      %1716 = vmatprep.subr.mxu0 0.0
      %1717 = vmatpush1.msra.mxu0 0.0
      %1718 = vmatprep.subr.mxu0 0.0
      %1719 = vmatpush1.msra.mxu0 0.0
      %1720 = vmatprep.subr.mxu0 0.0
      %1721 = vmatpush1.msra.mxu0 0.0
      %1722 = vmatprep.subr.mxu0 0.0
      %1723 = vmatpush1.msra.mxu0 0.0
      %1724 = vmatprep.subr.mxu0 0.0
      %1725 = vmatpush1.msra.mxu0 0.0
      %1726 = vmatprep.subr.mxu0 0.0
      %1727 = vmatpush1.msra.mxu0 0.0
      %1728 = vmatprep.subr.mxu0 0.0
      %1729 = vmatpush1.msra.mxu0 0.0
      %1730 = vmatprep.subr.mxu0 0.0
      %1731 = vmatpush1.msra.mxu0 0.0
      %1732 = vmatprep.subr.mxu0 0.0
      %1733 = vmatpush1.msra.mxu0 0.0
      %1734 = vmatprep.subr.mxu0 0.0
      %1735 = vmatpush1.msra.mxu0 0.0
      %1736 = vmatprep.subr.mxu0 0.0
      %1737 = vmatpush1.msra.mxu0 0.0
      %1738 = vmatprep.subr.mxu0 0.0
      %1739 = vmatpush1.msra.mxu0 0.0
      %1740 = vmatprep.subr.mxu0 0.0
      %1741 = vmatpush1.msra.mxu0 0.0
      %1742 = vmatprep.subr.mxu0 0.0
      %1743 = vmatpush1.msra.mxu0 0.0
      %1744 = vmatprep.subr.mxu0 0.0
      %1745 = vmatpush1.msra.mxu0 0.0
      %1746 = vmatprep.subr.mxu0 0.0
      %1747 = vmatpush1.msra.mxu0 0.0
      %1748 = vmatprep.subr.mxu0 0.0
      %1749 = vmatpush1.msra.mxu0 0.0
      %1750 = vmatprep.mubr.f32.mxu0 0.0
      %1751 = vmatmul.mubr.f32.gmra.mrb[0].mxu0 %v1654
      %v1752 = vpop.f32.mrb[0].mxu0
      %v1753 = vadd.f32 0.0, %v1752
      %v1754 = vpop.f32.mrb[0].mxu0
      %1755 = vmatprep.mubr.f32.mxu0 0.0
      %1756 = vmatmul.mubr.f32.gmra.mrb[0].mxu0 %v1656
      %v1757 = vpop.f32.mrb[0].mxu0
      %v1758 = vadd.f32 0.0, %v1757
      %v1759 = vpop.f32.mrb[0].mxu0
      %1760 = vmatprep.mubr.f32.mxu0 0.0
      %1761 = vmatmul.mubr.f32.gmra.mrb[0].mxu0 %v1658
      %v1762 = vpop.f32.mrb[0].mxu0
      %v1763 = vadd.f32 0.0, %v1762
      %v1764 = vpop.f32.mrb[0].mxu0
      %1765 = vmatprep.mubr.f32.mxu0 0.0
      %1766 = vmatmul.mubr.f32.gmra.mrb[0].mxu0 %v1660
      %v1767 = vpop.f32.mrb[0].mxu0
      %v1768 = vadd.f32 0.0, %v1767
      %v1769 = vpop.f32.mrb[0].mxu0
      %1770 = vmatprep.mubr.f32.mxu0 0.0
      %1771 = vmatmul.mubr.f32.gmra.mrb[0].mxu0 %v1662
      %v1772 = vpop.f32.mrb[0].mxu0
      %v1773 = vadd.f32 0.0, %v1772
      %v1774 = vpop.f32.mrb[0].mxu0
      %1775 = vmatprep.mubr.f32.mxu0 0.0
      %1776 = vmatmul.mubr.f32.gmra.mrb[0].mxu0 %v1664
      %v1777 = vpop.f32.mrb[0].mxu0
      %v1778 = vadd.f32 0.0, %v1777
      %v1779 = vpop.f32.mrb[0].mxu0
      %1780 = vmatprep.mubr.f32.mxu0 0.0
      %1781 = vmatmul.mubr.f32.gmra.mrb[0].mxu0 %v1666
      %v1782 = vpop.f32.mrb[0].mxu0
      %v1783 = vadd.f32 0.0, %v1782
      %v1784 = vpop.f32.mrb[0].mxu0
      %1785 = vmatprep.mubr.f32.mxu0 0.0
      %1786 = vmatmul.mubr.f32.gmra.mrb[0].mxu0 %v1668
      %v1787 = vpop.f32.mrb[0].mxu0
      %v1788 = vadd.f32 0.0, %v1787
      %v1789 = vpop.f32.mrb[0].mxu0
      %1790 = vmatprep.mubr.f32.mxu0 0.0
      %1791 = vmatmul.mubr.f32.gmra.mrb[0].mxu0 %v1670
      %v1792 = vpop.f32.mrb[0].mxu0
      %v1793 = vadd.f32 0.0, %v1792
      %v1794 = vpop.f32.mrb[0].mxu0
      %1795 = vmatprep.mubr.f32.mxu0 0.0
      %1796 = vmatmul.mubr.f32.gmra.mrb[0].mxu0 %v1672
      %v1797 = vpop.f32.mrb[0].mxu0
      %v1798 = vadd.f32 0.0, %v1797
      %v1799 = vpop.f32.mrb[0].mxu0
      %1800 = vmatprep.mubr.f32.mxu0 0.0
      %1801 = vmatmul.mubr.f32.gmra.mrb[0].mxu0 %v1674
      %v1802 = vpop.f32.mrb[0].mxu0
      %v1803 = vadd.f32 0.0, %v1802
      %v1804 = vpop.f32.mrb[0].mxu0
      %1805 = vmatprep.mubr.f32.mxu0 0.0
      %1806 = vmatmul.mubr.f32.gmra.mrb[0].mxu0 %v1676
      %v1807 = vpop.f32.mrb[0].mxu0
      %v1808 = vadd.f32 0.0, %v1807
      %v1809 = vpop.f32.mrb[0].mxu0
      %1810 = vmatprep.mubr.f32.mxu0 0.0
      %1811 = vmatmul.mubr.f32.gmra.mrb[0].mxu0 %v1678
      %v1812 = vpop.f32.mrb[0].mxu0
      %v1813 = vadd.f32 0.0, %v1812
      %v1814 = vpop.f32.mrb[0].mxu0
      %1815 = vmatprep.mubr.f32.mxu0 0.0
      %1816 = vmatmul.mubr.f32.gmra.mrb[0].mxu0 %v1680
      %v1817 = vpop.f32.mrb[0].mxu0
      %v1818 = vadd.f32 0.0, %v1817
      %v1819 = vpop.f32.mrb[0].mxu0
      %1820 = vmatprep.mubr.f32.mxu0 0.0
      %1821 = vmatmul.mubr.f32.gmra.mrb[0].mxu0 %v1682
      %v1822 = vpop.f32.mrb[0].mxu0
      %v1823 = vadd.f32 0.0, %v1822
      %v1824 = vpop.f32.mrb[0].mxu0
      %1825 = vmatprep.mubr.f32.mxu0 0.0
      %1826 = vmatmul.mubr.f32.gmra.mrb[0].mxu0 %v1684
      %v1827 = vpop.f32.mrb[0].mxu0
      %v1828 = vadd.f32 0.0, %v1827
      %v1829 = vpop.f32.mrb[0].mxu0
      %1830 = vdwg.mxu0
      %1847 = vrot.lane.b32.xlu0 %v1753, 4
      %v1848 = vpop.permute.xlu0 %1847
      %1849 = vrot.lane.b32.xlu0 %v1758, 4
      %v1850 = vpop.permute.xlu0 %1849
      %1851 = vrot.lane.b32.xlu0 %v1763, 4
      %v1852 = vpop.permute.xlu0 %1851
      %1853 = vrot.lane.b32.xlu0 %v1768, 4
      %v1854 = vpop.permute.xlu0 %1853
      %1855 = vrot.lane.b32.xlu0 %v1773, 4
      %v1856 = vpop.permute.xlu0 %1855
      %1857 = vrot.lane.b32.xlu0 %v1778, 4
      %v1858 = vpop.permute.xlu0 %1857
      %1859 = vrot.lane.b32.xlu0 %v1783, 4
      %v1860 = vpop.permute.xlu0 %1859
      %1861 = vrot.lane.b32.xlu0 %v1788, 4
      %v1862 = vpop.permute.xlu0 %1861
      %1863 = vrot.lane.b32.xlu0 %v1793, 4
      %v1864 = vpop.permute.xlu0 %1863
      %1865 = vrot.lane.b32.xlu0 %v1798, 4
      %v1866 = vpop.permute.xlu0 %1865
      %1867 = vrot.lane.b32.xlu0 %v1803, 4
      %v1868 = vpop.permute.xlu0 %1867
      %1869 = vrot.lane.b32.xlu0 %v1808, 4
      %v1870 = vpop.permute.xlu0 %1869
      %1871 = vrot.lane.b32.xlu0 %v1813, 4
      %v1872 = vpop.permute.xlu0 %1871
      %1873 = vrot.lane.b32.xlu0 %v1818, 4
      %v1874 = vpop.permute.xlu0 %1873
      %1875 = vrot.lane.b32.xlu0 %v1823, 4
      %v1876 = vpop.permute.xlu0 %1875
      %1877 = vrot.lane.b32.xlu0 %v1828, 4
      %v1878 = vpop.permute.xlu0 %1877
      %v1895 = vsel %vm346, %v1493, %v1848
      %v1896 = vsel %vm346, %v1498, %v1850
      %v1897 = vsel %vm346, %v1503, %v1852
      %v1898 = vsel %vm346, %v1508, %v1854
      %v1899 = vsel %vm346, %v1513, %v1856
      %v1900 = vsel %vm346, %v1518, %v1858
      %v1901 = vsel %vm346, %v1523, %v1860
      %v1902 = vsel %vm346, %v1528, %v1862
      %v1903 = vsel %vm346, %v1533, %v1864
      %v1904 = vsel %vm346, %v1538, %v1866
      %v1905 = vsel %vm346, %v1543, %v1868
      %v1906 = vsel %vm346, %v1548, %v1870
      %v1907 = vsel %vm346, %v1553, %v1872
      %v1908 = vsel %vm346, %v1558, %v1874
      %v1909 = vsel %vm346, %v1563, %v1876
      %v1910 = vsel %vm346, %v1568, %v1878
      %v1911 = vld [vmem:[%s2] sm:$0x1]
      %v1913 = vlaneseq
      %v1914 = vshrl.u32 %v1913, 7
      %v1915 = vsub.s32 0, %v1914
      %v1916 = vrot.slane %v1911, %v1915
      %v1918 = vadd.f32 %v1895, %v1916
      %v1919 = vadd.f32 %v1896, %v1916
      %v1920 = vadd.f32 %v1897, %v1916
      %v1921 = vadd.f32 %v1898, %v1916
      %v1922 = vadd.f32 %v1899, %v1916
      %v1923 = vadd.f32 %v1900, %v1916
      %v1924 = vadd.f32 %v1901, %v1916
      %v1925 = vadd.f32 %v1902, %v1916
      %v1926 = vadd.f32 %v1903, %v1916
      %v1927 = vadd.f32 %v1904, %v1916
      %v1928 = vadd.f32 %v1905, %v1916
      %v1929 = vadd.f32 %v1906, %v1916
      %v1930 = vadd.f32 %v1907, %v1916
      %v1931 = vadd.f32 %v1908, %v1916
      %v1932 = vadd.f32 %v1909, %v1916
      %v1933 = vadd.f32 %v1910, %v1916
      %s1934 = scalar_lea.vmem %s194, 16
      %1935 = vst.msk [vmem:[%s1934] sm:$0xff] %vm484, %v1918
      %1936 = vst.msk [vmem:[%s1934 + $0x8] sm:$0xff] %vm484, %v1919
      %1937 = vst.msk [vmem:[%s1934 + $0x20] sm:$0xff] %vm484, %v1920
      %1938 = vst.msk [vmem:[%s1934 + $0x28] sm:$0xff] %vm484, %v1921
      %1939 = vst.msk [vmem:[%s1934 + $0x40] sm:$0xff] %vm484, %v1922
      %1940 = vst.msk [vmem:[%s1934 + $0x48] sm:$0xff] %vm484, %v1923
      %1941 = vst.msk [vmem:[%s1934 + $0x60] sm:$0xff] %vm484, %v1924
      %1942 = vst.msk [vmem:[%s1934 + $0x68] sm:$0xff] %vm484, %v1925
      %1943 = vst.msk [vmem:[%s1934 + $0x80] sm:$0xff] %vm484, %v1926
      %1944 = vst.msk [vmem:[%s1934 + $0x88] sm:$0xff] %vm484, %v1927
      %1945 = vst.msk [vmem:[%s1934 + $0xa0] sm:$0xff] %vm484, %v1928
      %1946 = vst.msk [vmem:[%s1934 + $0xa8] sm:$0xff] %vm484, %v1929
      %1947 = vst.msk [vmem:[%s1934 + $0xc0] sm:$0xff] %vm484, %v1930
      %1948 = vst.msk [vmem:[%s1934 + $0xc8] sm:$0xff] %vm484, %v1931
      %1949 = vst.msk [vmem:[%s1934 + $0xe0] sm:$0xff] %vm484, %v1932
      %1950 = vst.msk [vmem:[%s1934 + $0xe8] sm:$0xff] %vm484, %v1933
      %s1951 = smul.u32 8, %s19
      %p1952 = scmp.lt.s32.totalorder %s18, 1
      %s1953 = scalar_select %p1952, %s18, 1
      %p1954 = scmp.lt.s32.totalorder %s1951, 15
      %s1955 = scalar_select %p1954, %s1951, 15
      %s1956 = smul.addr %s1955, 4
      %s1957 = smul.addr %s1953, 64
      %s1958 = sadd.s32 %s1956, %s1957
      %s1959 = smul.addr %s1958, 8
      %s1960 = scalar_lea.vmem %s3, %s1959
      // Predicated region
      $region33: #{a_call__.1} parent=31 // pred_check
        %p1961 = pneg %p114
      $region34: #{a_call__.1} parent=31 // pred_check_branch
        %1963 = sbr.rel (%p1961) target = $region36
      $region35: #{a_call__.1} parent=31 // pred_region
        %s1964 = smul.u32 8, %s19
      $region36: #{a_call__.1} parent=31 // pred_fallthru
        _
    $region32: #{a_call__.1} parent=5 // pred_fallthru
      _
    %p1965 = scmp.le.s32.totalorder 2, %s9
    // Predicated region
    $region37: #{a_call__.1} parent=5 // pred_check
      %p1966 = pneg %p1965
    $region38: #{a_call__.1} parent=5 // pred_check_branch
      %1968 = sbr.rel (%p1966) target = $region40
    $region39: #{a_call__.1} parent=5 // pred_region
      %s1969 = ssub.s32 %s9, 2
      // Predicated region
      $region41: #{a_call__.1} parent=39 // pred_check
        %p1970 = pneg %p120
      $region42: #{a_call__.1} parent=39 // pred_check_branch
        %1972 = sbr.rel (%p1970) target = $region44
      $region43: #{a_call__.1} parent=39 // pred_region
        %s1973 = smul.u32 8, %s21
        %p1974 = scmp.lt.s32.totalorder %s20, 1
        %s1975 = scalar_select %p1974, %s20, 1
        %p1976 = scmp.lt.s32.totalorder %s1973, 15
        %s1977 = scalar_select %p1976, %s1973, 15
        %s1978 = smul.addr %s1977, 4
        %s1979 = smul.addr %s1975, 64
        %s1980 = sadd.s32 %s1978, %s1979
        %s1981 = smul.addr %s1980, 8
        %s1982 = scalar_lea.vmem %s3, %s1981
      $region44: #{a_call__.1} parent=39 // pred_fallthru
        _
    $region40: #{a_call__.1} parent=5 // pred_fallthru
      _
  $region6: #{a_call__.1} parent=0 // loop_footer
    %s13 = sadd.s32 1, %s9
  $region7: #{a_call__.1} parent=0 // loop_footer_branch
    %8 = sbr.rel target = $region3
  $region8: #{a_call__.1} parent=0 // loop_exit
    _

</llo_original>
